<compile_context>
chip_gen: v5e
topology: v5e:2x2
jax: 0.10.0
libtpu: 0.0.40
codegen_flags: <defaults>
</compile_context>

<pallas_src>
import functools
import math

import jax
import jax.numpy as jnp
from jax import lax
from jax.experimental import pallas as pl
from jax.experimental.pallas import tpu as pltpu


_BLOCKED_WEIGHTS = ("qkvw", "qkvb", "wo", "bo", "ln1w", "ln1b",
                    "w1", "b1", "w2", "b2", "ln2w", "ln2b")
_RESIDENT_WEIGHTS = ("wfin", "bfin")


def _layernorm(v, w, b, eps=1e-5):
    # var = E[x^2] - mu^2: two independent cross-lane reductions (they overlap
    # on the XLU); rsqrt goes to the EUP slot.
    mu = jnp.mean(v, axis=-1, keepdims=True)
    ms = jnp.mean(v * v, axis=-1, keepdims=True)
    var = ms - mu * mu
    return (v - mu) * lax.rsqrt(var + eps) * w + b


def _setrank_kernel(
    x_ref,                       # (BB*N, D)       f32   (blocked by g)
    qkvw_ref, qkvb_ref,          # (1, D, 3D) cdt, (1, 1, 3D) f32  (blocked by l)
    wo_ref, bo_ref,              # (1, D, D)  cdt, (1, 1, D)  f32
    ln1w_ref, ln1b_ref,          # (1, 1, D)  f32
    w1_ref, b1_ref,              # (1, D, FF) cdt, (1, 1, FF) f32
    w2_ref, b2_ref,              # (1, FF, D) cdt, (1, 1, D)  f32
    ln2w_ref, ln2b_ref,          # (1, 1, D)  f32
    wfin_ref, bfin_ref,          # (1, D) cdt, (1, 1) f32  (grid-resident)
    out_ref,                     # (1, 1, BB*N)    f32
    x_acc,                       # VMEM scratch (BB*N, D) f32 residual stream
    *,
    nhead: int,
    seq_len: int,
    compute_dtype,
):
    f32 = jnp.float32
    l = pl.program_id(1)
    num_layers = pl.num_programs(1)
    R, D = x_acc.shape
    N = seq_len
    BB = R // N
    H = nhead
    dh = D // H

    # Residual stream persists in f32 across the "arbitrary" layer axis.
    @pl.when(l == 0)
    def _():
        x_acc[...] = x_ref[...].astype(f32)

    x = x_acc[...]

    # ---------------- multi-head self-attention -------------------------
    xc = x.astype(compute_dtype)
    # Fused QKV projection; 1/sqrt(dh) is folded into the q columns host-side.
    qkv = jnp.dot(xc, qkvw_ref[0], preferred_element_type=f32) + qkvb_ref[0]  # (R,3D)

    def head_slab(base, h):
        # lane slice of one head + leading-dim split: (R, dh) -> (BB, N, dh)
        return qkv[:, base + h * dh: base + (h + 1) * dh].reshape(BB, N, dh)

    # Batch sets AND heads along the leading (untiled) axis: (H*BB, N, dh),
    # batch index order = (h, b).
    q3 = jnp.concatenate([head_slab(0, h) for h in range(H)], axis=0).astype(compute_dtype)
    k3 = jnp.concatenate([head_slab(D, h) for h in range(H)], axis=0).astype(compute_dtype)
    v3 = jnp.concatenate([head_slab(2 * D, h) for h in range(H)], axis=0).astype(compute_dtype)

    s = jnp.einsum("bqd,bkd->bqk", q3, k3, preferred_element_type=f32)   # (H*BB,N,N)
    s = s - jnp.max(s, axis=-1, keepdims=True)
    p = jnp.exp(s)
    p = p * pl.reciprocal(jnp.sum(p, axis=-1, keepdims=True), approx=True)
    a3 = jnp.einsum("bqk,bkd->bqd", p.astype(compute_dtype), v3,
                    preferred_element_type=f32)                           # (H*BB,N,dh)

    # Heads back onto the lane axis in natural (head-major) concat order, then
    # a single (R,D)x(D,D) out-projection.
    a4 = a3.reshape(H, BB, N, dh)
    a = jnp.concatenate([a4[h].reshape(R, dh) for h in range(H)], axis=-1)  # (R, D)
    attn = jnp.dot(a.astype(compute_dtype), wo_ref[0],
                   preferred_element_type=f32) + bo_ref[0]

    # residual + post-norm (dropout == identity at inference)
    x = _layernorm(x + attn, ln1w_ref[0], ln1b_ref[0])

    # ---------------- feed-forward block ---------------------------------
    h1 = jnp.dot(x.astype(compute_dtype), w1_ref[0],
                 preferred_element_type=f32) + b1_ref[0]
    h1 = jnp.maximum(h1, 0.0)                       # ReLU (default activation)
    h2 = jnp.dot(h1.astype(compute_dtype), w2_ref[0],
                 preferred_element_type=f32) + b2_ref[0]
    x = _layernorm(x + h2, ln2w_ref[0], ln2b_ref[0])

    x_acc[...] = x

    # ---------------- final scoring head (Linear D -> 1) ------------------
    @pl.when(l == num_layers - 1)
    def _():
        # Contract the last dims of (1,D) and (R,D): the MXU consumes the
        # transposed operand and the (1, R) result is a lane-dense output row.
        scores = lax.dot_general(
            wfin_ref[...], x.astype(compute_dtype),
            dimension_numbers=(((1,), (1,)), ((), ())),
            preferred_element_type=f32) + bfin_ref[...]
        out_ref[...] = scores[None]                 # (1, 1, R)


def prepare_params(torch_params, *, nhead, compute_dtype):
    """Convert PyTorch-layout parameters into the kernel layout.

    Weights are pre-transposed to [in, out]; q/k/v are fused into one (D, 3D)
    weight with the 1/sqrt(dh) q-scale folded in; matmul weights are cast to
    compute_dtype.  Biases / LayerNorm params stay float32.
    """
    f32 = jnp.float32
    in_w = jnp.asarray(torch_params["in_proj_w"], f32)       # (L, 3D, D)
    in_b = jnp.asarray(torch_params["in_proj_b"], f32)       # (L, 3D)
    L, threeD, D = in_w.shape
    dh = D // nhead
    scale = 1.0 / math.sqrt(dh)

    # Fold the q-scale and fuse [q | k | v] into one (D, 3D) weight per layer.
    qkv_scale = jnp.concatenate([jnp.full((D,), scale, f32),
                                 jnp.ones((2 * D,), f32)])
    qkvw = (in_w * qkv_scale[None, :, None]).transpose(0, 2, 1)   # (L, D, 3D)
    qkvb = (in_b * qkv_scale[None, :]).reshape(L, 1, 3 * D)

    return dict(
        qkvw=qkvw.astype(compute_dtype),
        qkvb=qkvb.astype(f32),
        wo=jnp.asarray(torch_params["out_proj_w"], f32).transpose(0, 2, 1).astype(compute_dtype),
        bo=jnp.asarray(torch_params["out_proj_b"], f32).reshape(L, 1, D),
        ln1w=jnp.asarray(torch_params["ln1_w"], f32).reshape(L, 1, D),
        ln1b=jnp.asarray(torch_params["ln1_b"], f32).reshape(L, 1, D),
        w1=jnp.asarray(torch_params["lin1_w"], f32).transpose(0, 2, 1).astype(compute_dtype),
        b1=jnp.asarray(torch_params["lin1_b"], f32)[:, None, :],
        w2=jnp.asarray(torch_params["lin2_w"], f32).transpose(0, 2, 1).astype(compute_dtype),
        b2=jnp.asarray(torch_params["lin2_b"], f32)[:, None, :],
        ln2w=jnp.asarray(torch_params["ln2_w"], f32).reshape(L, 1, D),
        ln2b=jnp.asarray(torch_params["ln2_b"], f32).reshape(L, 1, D),
        wfin=jnp.asarray(torch_params["lin_w"], f32).astype(compute_dtype),   # (1, D)
        bfin=jnp.asarray(torch_params["lin_b"], f32).reshape(1, 1),
    )


def set_rank_forward(candidates, torch_params, *, nhead, num_layers,
                     compute_dtype=jnp.bfloat16, sets_per_block=None):
    """candidates: [B, N, D] float32 -> scores [B, N] float32.

    sets_per_block: candidate sets per grid step along the "parallel" axis
    (default: all B, i.e. one step).  On v7x pick B // 2 so both TensorCores
    are used; on v5e/v6e keep it as large as VMEM allows.
    """
    B, N, D = candidates.shape
    assert D % nhead == 0
    BB = B if sets_per_block is None else sets_per_block
    assert B % BB == 0
    G = B // BB
    R = BB * N
    assert G == 1 or R % 8 == 0, "pick sets_per_block so BB*N is a multiple of 8"

    p = prepare_params(torch_params, nhead=nhead, compute_dtype=compute_dtype)
    L = p["qkvw"].shape[0]
    assert L == num_layers
    FF = p["w1"].shape[-1]

    blocked = [p[k] for k in _BLOCKED_WEIGHTS]
    resident = [p[k] for k in _RESIDENT_WEIGHTS]

    # Activations flattened host-side so every grid step sees a fat (BB*N, D)
    # slab; per-layer weights are streamed via the "arbitrary" layer axis.
    x2d = candidates.astype(jnp.float32).reshape(B * N, D)

    def layer_spec(a):
        return pl.BlockSpec((1, a.shape[1], a.shape[2]), lambda g, l: (l, 0, 0))

    in_specs = [pl.BlockSpec((R, D), lambda g, l: (g, 0))]
    in_specs += [layer_spec(a) for a in blocked]
    in_specs += [pl.BlockSpec(memory_space=pltpu.MemorySpace.VMEM) for _ in resident]

    # VMEM budget: double-buffered one-layer weights + activation block +
    # residual scratch + intermediates + output row (capped to v7x's 64 MiB).
    per_layer_bytes = sum(a.nbytes // L for a in blocked)
    resident_bytes = sum(a.nbytes for a in resident)
    act_bytes = R * D * 4
    interm_bytes = 3 * R * max(3 * D, FF) * 4 + 2 * BB * nhead * N * N * 4
    vmem_limit = int(min(max(2 * per_layer_bytes + resident_bytes
                             + 3 * act_bytes + interm_bytes
                             + 2 * R * 4 + (8 << 20),
                             32 << 20),
                         64 << 20))

    out = pl.pallas_call(
        functools.partial(_setrank_kernel, nhead=nhead, seq_len=N,
                          compute_dtype=compute_dtype),
        out_shape=jax.ShapeDtypeStruct((G, 1, R), jnp.float32),
        grid=(G, num_layers),
        in_specs=in_specs,
        out_specs=pl.BlockSpec((1, 1, R), lambda g, l: (g, 0, 0)),
        scratch_shapes=[pltpu.VMEM((R, D), jnp.float32)],
        compiler_params=pltpu.CompilerParams(
            dimension_semantics=("parallel", "arbitrary"),
            vmem_limit_bytes=vmem_limit,
        ),
    )(x2d, *blocked, *resident)
    return out.reshape(B, N)


def _reference_forward(candidates, tp, *, nhead, num_layers):
    """Pure-JAX f32 reference implementing the PyTorch module math."""
    x = candidates.astype(jnp.float32)
    B, N, D = x.shape
    dh = D // nhead
    scale = 1.0 / math.sqrt(dh)

    def ln(v, w, b, eps=1e-5):
        mu = jnp.mean(v, axis=-1, keepdims=True)
        var = jnp.mean((v - mu) ** 2, axis=-1, keepdims=True)
        return (v - mu) / jnp.sqrt(var + eps) * w + b

    for l in range(num_layers):
        qkv = x @ tp["in_proj_w"][l].T + tp["in_proj_b"][l]
        q, k, v = qkv[..., :D], qkv[..., D:2 * D], qkv[..., 2 * D:]
        q = q.reshape(B, N, nhead, dh).transpose(0, 2, 1, 3) * scale
        k = k.reshape(B, N, nhead, dh).transpose(0, 2, 1, 3)
        v = v.reshape(B, N, nhead, dh).transpose(0, 2, 1, 3)
        s = jnp.einsum("bhnd,bhmd->bhnm", q, k)
        a = jnp.einsum("bhnm,bhmd->bhnd", jax.nn.softmax(s, axis=-1), v)
        a = a.transpose(0, 2, 1, 3).reshape(B, N, D)
        a = a @ tp["out_proj_w"][l].T + tp["out_proj_b"][l]
        x = ln(x + a, tp["ln1_w"][l], tp["ln1_b"][l])
        h = jnp.maximum(x @ tp["lin1_w"][l].T + tp["lin1_b"][l], 0.0)
        h = h @ tp["lin2_w"][l].T + tp["lin2_b"][l]
        x = ln(x + h, tp["ln2_w"][l], tp["ln2_b"][l])
    return jnp.einsum("bnd,od->bno", x, tp["lin_w"])[..., 0] + tp["lin_b"][0]


if __name__ == "__main__":
    # Small shapes consistent with the module.
    B, N = 2, 8                # batch of candidate sets, 8 candidates each
    IN_DIM = 32                # d_model
    NHEAD = 4
    DIM_FF = 64
    NUM_LAYERS = 2

    keys = iter(jax.random.split(jax.random.PRNGKey(0), 32))

    def rnd(shape, scale=0.1):
        return scale * jax.random.normal(next(keys), shape, jnp.float32)

    L, D, FF = NUM_LAYERS, IN_DIM, DIM_FF
    torch_params = {
        # PyTorch nn.TransformerEncoderLayer layout (out_features, in_features)
        "in_proj_w": rnd((L, 3 * D, D)), "in_proj_b": rnd((L, 3 * D)),
        "out_proj_w": rnd((L, D, D)),    "out_proj_b": rnd((L, D)),
        "ln1_w": 1.0 + rnd((L, D)),      "ln1_b": rnd((L, D)),
        "lin1_w": rnd((L, FF, D)),       "lin1_b": rnd((L, FF)),
        "lin2_w": rnd((L, D, FF)),       "lin2_b": rnd((L, D)),
        "ln2_w": 1.0 + rnd((L, D)),      "ln2_b": rnd((L, D)),
        # final scoring head nn.Linear(D, 1)
        "lin_w": rnd((1, D)),            "lin_b": rnd((1,)),
    }
    candidates = jax.random.normal(next(keys), (B, N, IN_DIM), jnp.float32)

    ref = _reference_forward(candidates, torch_params,
                             nhead=NHEAD, num_layers=NUM_LAYERS)

    # f32 compute path (tight-ish tolerance; approx reciprocal in softmax).
    s_f32 = set_rank_forward(candidates, torch_params, nhead=NHEAD,
                             num_layers=NUM_LAYERS, compute_dtype=jnp.float32)
    s_f32 = jax.block_until_ready(s_f32)
    assert s_f32.shape == (B, N), s_f32.shape
    assert jnp.allclose(s_f32, ref, rtol=1e-2, atol=1e-2), (
        float(jnp.max(jnp.abs(s_f32 - ref)))
    )

    # bf16 MXU path (recommended config; looser tolerance).
    s_bf16 = set_rank_forward(candidates, torch_params, nhead=NHEAD,
                              num_layers=NUM_LAYERS, compute_dtype=jnp.bfloat16)
    s_bf16 = jax.block_until_ready(s_bf16)
    assert s_bf16.shape == (B, N), s_bf16.shape
    assert jnp.allclose(s_bf16, ref, rtol=5e-2, atol=5e-2), (
        float(jnp.max(jnp.abs(s_bf16 - ref)))
    )

    # G > 1: exercise the "parallel" set axis (v7x dual-TensorCore path).
    s_split = set_rank_forward(candidates, torch_params, nhead=NHEAD,
                               num_layers=NUM_LAYERS,
                               compute_dtype=jnp.bfloat16, sets_per_block=1)
    s_split = jax.block_until_ready(s_split)
    assert s_split.shape == (B, N), s_split.shape
    assert jnp.allclose(s_split, ref, rtol=5e-2, atol=5e-2), (
        float(jnp.max(jnp.abs(s_split - ref)))
    )

    # TODO(synk): at very small d_model/dim_feedforward (like this test's 32/64)
    # zero-padding D/FF to 128 lanes would further fill the VPU/MXU; skipped to
    # keep LayerNorm/softmax extents exact and the kernel simple.
    print("KERNEL_OK")
</pallas_src>

<mosaic_0001>
module attributes {stable_mosaic.version = 11 : i64} {
  func.func @_setrank_kernel(%arg0: i32, %arg1: i32, %arg2: memref<16x32xf32, #tpu.memory_space<vmem>>, %arg3: memref<1x32x96xf32, #tpu.memory_space<vmem>>, %arg4: memref<1x1x96xf32, #tpu.memory_space<vmem>>, %arg5: memref<1x32x32xf32, #tpu.memory_space<vmem>>, %arg6: memref<1x1x32xf32, #tpu.memory_space<vmem>>, %arg7: memref<1x1x32xf32, #tpu.memory_space<vmem>>, %arg8: memref<1x1x32xf32, #tpu.memory_space<vmem>>, %arg9: memref<1x32x64xf32, #tpu.memory_space<vmem>>, %arg10: memref<1x1x64xf32, #tpu.memory_space<vmem>>, %arg11: memref<1x64x32xf32, #tpu.memory_space<vmem>>, %arg12: memref<1x1x32xf32, #tpu.memory_space<vmem>>, %arg13: memref<1x1x32xf32, #tpu.memory_space<vmem>>, %arg14: memref<1x1x32xf32, #tpu.memory_space<vmem>>, %arg15: memref<1x32xf32, #tpu.memory_space<vmem>>, %arg16: memref<1x1xf32, #tpu.memory_space<vmem>>, %arg17: memref<1x1x16xf32, #tpu.memory_space<vmem>>, %arg18: memref<16x32xf32, #tpu.memory_space<vmem>>) attributes {dimension_semantics = [#tpu.dimension_semantics<parallel>, #tpu.dimension_semantics<arbitrary>], iteration_bounds = array<i64: 1, 2>, scalar_prefetch = 0 : i64, scratch_operands = 1 : i64, tpu.core_type = #tpu.core_type<tc>, window_params = [{transform_indices = @transform_0, window_bounds = array<i64: 16, 32>}, {transform_indices = @transform_1, window_bounds = array<i64: 1, 32, 96>}, {transform_indices = @transform_2, window_bounds = array<i64: 1, 1, 96>}, {transform_indices = @transform_3, window_bounds = array<i64: 1, 32, 32>}, {transform_indices = @transform_4, window_bounds = array<i64: 1, 1, 32>}, {transform_indices = @transform_5, window_bounds = array<i64: 1, 1, 32>}, {transform_indices = @transform_6, window_bounds = array<i64: 1, 1, 32>}, {transform_indices = @transform_7, window_bounds = array<i64: 1, 32, 64>}, {transform_indices = @transform_8, window_bounds = array<i64: 1, 1, 64>}, {transform_indices = @transform_9, window_bounds = array<i64: 1, 64, 32>}, {transform_indices = @transform_10, window_bounds = array<i64: 1, 1, 32>}, {transform_indices = @transform_11, window_bounds = array<i64: 1, 1, 32>}, {transform_indices = @transform_12, window_bounds = array<i64: 1, 1, 32>}, {pipeline_mode = #tpu.pipeline_mode<synchronous>, transform_indices = @transform_13, window_bounds = array<i64: 1, 32>}, {pipeline_mode = #tpu.pipeline_mode<synchronous>, transform_indices = @transform_14, window_bounds = array<i64: 1, 1>}, {transform_indices = @transform_15, window_bounds = array<i64: 1, 1, 16>}]} {
    %c0_i32 = arith.constant 0 : i32
    %0 = arith.cmpi eq, %arg1, %c0_i32 : i32
    %1 = arith.extui %0 : i1 to i32
    %c0_i32_0 = arith.constant 0 : i32
    %2 = arith.cmpi ne, %1, %c0_i32_0 : i32
    scf.if %2 {
      %c0_59 = arith.constant 0 : index
      %c0_60 = arith.constant 0 : index
      %145 = vector.load %arg2[%c0_59, %c0_60] : memref<16x32xf32, #tpu.memory_space<vmem>>, vector<16x32xf32>
      %c0_61 = arith.constant 0 : index
      %c0_62 = arith.constant 0 : index
      %146 = vector.load %arg18[%c0_61, %c0_62] : memref<16x32xf32, #tpu.memory_space<vmem>>, vector<16x32xf32>
      tpu.vector_store %arg18[%c0_61, %c0_62], %145 {strides = array<i32>} : memref<16x32xf32, #tpu.memory_space<vmem>>, vector<16x32xf32>,
    } else {
    }
    %c0 = arith.constant 0 : index
    %c0_1 = arith.constant 0 : index
    %3 = vector.load %arg18[%c0, %c0_1] : memref<16x32xf32, #tpu.memory_space<vmem>>, vector<16x32xf32>
    %c0_2 = arith.constant 0 : index
    %c0_3 = arith.constant 0 : index
    %c0_4 = arith.constant 0 : index
    %4 = vector.load %arg3[%c0_2, %c0_3, %c0_4] : memref<1x32x96xf32, #tpu.memory_space<vmem>>, vector<1x32x96xf32>
    %5 = vector.shape_cast %4 : vector<1x32x96xf32> to vector<32x96xf32>
    %cst = arith.constant dense<0.000000e+00> : vector<16x96xf32>
    %6 = tpu.matmul %3, %5, %cst {dimension_numbers = #tpu.dot_dimension_numbers<[1], [0], [0], [1], [0, 0, 1, 1], [], []>} : vector<16x32xf32>, vector<32x96xf32>, vector<16x96xf32> -> vector<16x96xf32>
    %c0_5 = arith.constant 0 : index
    %c0_6 = arith.constant 0 : index
    %c0_7 = arith.constant 0 : index
    %7 = vector.load %arg4[%c0_5, %c0_6, %c0_7] : memref<1x1x96xf32, #tpu.memory_space<vmem>>, vector<1x1x96xf32>
    %8 = vector.shape_cast %7 : vector<1x1x96xf32> to vector<1x96xf32>
    %9 = vector.broadcast %8 : vector<1x96xf32> to vector<16x96xf32>
    %10 = arith.addf %6, %9 : vector<16x96xf32>
    %11 = vector.extract_strided_slice %10 {offsets = [0, 0], sizes = [16, 8], strides = [1, 1]} : vector<16x96xf32> to vector<16x8xf32>
    %12 = vector.shape_cast %11 : vector<16x8xf32> to vector<2x8x8xf32>
    %13 = vector.extract_strided_slice %10 {offsets = [0, 8], sizes = [16, 8], strides = [1, 1]} : vector<16x96xf32> to vector<16x8xf32>
    %14 = vector.shape_cast %13 : vector<16x8xf32> to vector<2x8x8xf32>
    %15 = vector.extract_strided_slice %10 {offsets = [0, 16], sizes = [16, 8], strides = [1, 1]} : vector<16x96xf32> to vector<16x8xf32>
    %16 = vector.shape_cast %15 : vector<16x8xf32> to vector<2x8x8xf32>
    %17 = vector.extract_strided_slice %10 {offsets = [0, 24], sizes = [16, 8], strides = [1, 1]} : vector<16x96xf32> to vector<16x8xf32>
    %18 = vector.shape_cast %17 : vector<16x8xf32> to vector<2x8x8xf32>
    %19 = tpu.concatenate %12, %14, %16, %18 in 0 : vector<2x8x8xf32>, vector<2x8x8xf32>, vector<2x8x8xf32>, vector<2x8x8xf32> -> vector<8x8x8xf32>
    %20 = vector.extract_strided_slice %10 {offsets = [0, 32], sizes = [16, 8], strides = [1, 1]} : vector<16x96xf32> to vector<16x8xf32>
    %21 = vector.shape_cast %20 : vector<16x8xf32> to vector<2x8x8xf32>
    %22 = vector.extract_strided_slice %10 {offsets = [0, 40], sizes = [16, 8], strides = [1, 1]} : vector<16x96xf32> to vector<16x8xf32>
    %23 = vector.shape_cast %22 : vector<16x8xf32> to vector<2x8x8xf32>
    %24 = vector.extract_strided_slice %10 {offsets = [0, 48], sizes = [16, 8], strides = [1, 1]} : vector<16x96xf32> to vector<16x8xf32>
    %25 = vector.shape_cast %24 : vector<16x8xf32> to vector<2x8x8xf32>
    %26 = vector.extract_strided_slice %10 {offsets = [0, 56], sizes = [16, 8], strides = [1, 1]} : vector<16x96xf32> to vector<16x8xf32>
    %27 = vector.shape_cast %26 : vector<16x8xf32> to vector<2x8x8xf32>
    %28 = tpu.concatenate %21, %23, %25, %27 in 0 : vector<2x8x8xf32>, vector<2x8x8xf32>, vector<2x8x8xf32>, vector<2x8x8xf32> -> vector<8x8x8xf32>
    %29 = vector.extract_strided_slice %10 {offsets = [0, 64], sizes = [16, 8], strides = [1, 1]} : vector<16x96xf32> to vector<16x8xf32>
    %30 = vector.shape_cast %29 : vector<16x8xf32> to vector<2x8x8xf32>
    %31 = vector.extract_strided_slice %10 {offsets = [0, 72], sizes = [16, 8], strides = [1, 1]} : vector<16x96xf32> to vector<16x8xf32>
    %32 = vector.shape_cast %31 : vector<16x8xf32> to vector<2x8x8xf32>
    %33 = vector.extract_strided_slice %10 {offsets = [0, 80], sizes = [16, 8], strides = [1, 1]} : vector<16x96xf32> to vector<16x8xf32>
    %34 = vector.shape_cast %33 : vector<16x8xf32> to vector<2x8x8xf32>
    %35 = vector.extract_strided_slice %10 {offsets = [0, 88], sizes = [16, 8], strides = [1, 1]} : vector<16x96xf32> to vector<16x8xf32>
    %36 = vector.shape_cast %35 : vector<16x8xf32> to vector<2x8x8xf32>
    %37 = tpu.concatenate %30, %32, %34, %36 in 0 : vector<2x8x8xf32>, vector<2x8x8xf32>, vector<2x8x8xf32>, vector<2x8x8xf32> -> vector<8x8x8xf32>
    "tpu.trace_start"() <{level = 10 : i32, message = "bqd,bkd->bqk"}> : () -> ()
    %cst_8 = arith.constant dense<0.000000e+00> : vector<8x8x8xf32>
    %38 = tpu.matmul %19, %28, %cst_8 {dimension_numbers = #tpu.dot_dimension_numbers<[2], [2], [1], [1], [0, 0, 0, 1, 1, 1], [0], [0]>} : vector<8x8x8xf32>, vector<8x8x8xf32>, vector<8x8x8xf32> -> vector<8x8x8xf32>
    "tpu.trace_stop"() : () -> ()
    %cst_9 = arith.constant dense<0xFF800000> : vector<8x8xf32>
    %39 = vector.multi_reduction <maximumf>, %38, %cst_9 [2] : vector<8x8x8xf32> to vector<8x8xf32>
    %40 = vector.shape_cast %39 : vector<8x8xf32> to vector<8x8x1xf32>
    %41 = vector.broadcast %40 : vector<8x8x1xf32> to vector<8x8x8xf32>
    %42 = arith.subf %38, %41 : vector<8x8x8xf32>
    %43 = math.exp %42 : vector<8x8x8xf32>
    %cst_10 = arith.constant dense<0.000000e+00> : vector<8x8xf32>
    %44 = vector.multi_reduction <add>, %43, %cst_10 [2] : vector<8x8x8xf32> to vector<8x8xf32>
    %45 = vector.shape_cast %44 : vector<8x8xf32> to vector<8x8x1xf32>
    %46 = tpu.reciprocal %45 {approx = true} : vector<8x8x1xf32> -> vector<8x8x1xf32>
    %47 = vector.broadcast %46 : vector<8x8x1xf32> to vector<8x8x8xf32>
    %48 = arith.mulf %43, %47 : vector<8x8x8xf32>
    "tpu.trace_start"() <{level = 10 : i32, message = "bqk,bkd->bqd"}> : () -> ()
    %cst_11 = arith.constant dense<0.000000e+00> : vector<8x8x8xf32>
    %49 = tpu.matmul %48, %37, %cst_11 {dimension_numbers = #tpu.dot_dimension_numbers<[2], [1], [1], [2], [0, 0, 0, 1, 1, 2], [0], [0]>} : vector<8x8x8xf32>, vector<8x8x8xf32>, vector<8x8x8xf32> -> vector<8x8x8xf32>
    "tpu.trace_stop"() : () -> ()
    %50 = vector.shape_cast %49 : vector<8x8x8xf32> to vector<4x2x8x8xf32>
    %51 = vector.extract_strided_slice %50 {offsets = [0, 0, 0, 0], sizes = [1, 2, 8, 8], strides = [1, 1, 1, 1]} : vector<4x2x8x8xf32> to vector<1x2x8x8xf32>
    %52 = vector.shape_cast %51 : vector<1x2x8x8xf32> to vector<2x8x8xf32>
    %53 = vector.shape_cast %52 : vector<2x8x8xf32> to vector<16x8xf32>
    %54 = vector.extract_strided_slice %50 {offsets = [1, 0, 0, 0], sizes = [1, 2, 8, 8], strides = [1, 1, 1, 1]} : vector<4x2x8x8xf32> to vector<1x2x8x8xf32>
    %55 = vector.shape_cast %54 : vector<1x2x8x8xf32> to vector<2x8x8xf32>
    %56 = vector.shape_cast %55 : vector<2x8x8xf32> to vector<16x8xf32>
    %57 = vector.extract_strided_slice %50 {offsets = [2, 0, 0, 0], sizes = [1, 2, 8, 8], strides = [1, 1, 1, 1]} : vector<4x2x8x8xf32> to vector<1x2x8x8xf32>
    %58 = vector.shape_cast %57 : vector<1x2x8x8xf32> to vector<2x8x8xf32>
    %59 = vector.shape_cast %58 : vector<2x8x8xf32> to vector<16x8xf32>
    %60 = vector.extract_strided_slice %50 {offsets = [3, 0, 0, 0], sizes = [1, 2, 8, 8], strides = [1, 1, 1, 1]} : vector<4x2x8x8xf32> to vector<1x2x8x8xf32>
    %61 = vector.shape_cast %60 : vector<1x2x8x8xf32> to vector<2x8x8xf32>
    %62 = vector.shape_cast %61 : vector<2x8x8xf32> to vector<16x8xf32>
    %63 = tpu.concatenate %53, %56, %59, %62 in 1 : vector<16x8xf32>, vector<16x8xf32>, vector<16x8xf32>, vector<16x8xf32> -> vector<16x32xf32>
    %c0_12 = arith.constant 0 : index
    %c0_13 = arith.constant 0 : index
    %c0_14 = arith.constant 0 : index
    %64 = vector.load %arg5[%c0_12, %c0_13, %c0_14] : memref<1x32x32xf32, #tpu.memory_space<vmem>>, vector<1x32x32xf32>
    %65 = vector.shape_cast %64 : vector<1x32x32xf32> to vector<32x32xf32>
    %cst_15 = arith.constant dense<0.000000e+00> : vector<16x32xf32>
    %66 = tpu.matmul %63, %65, %cst_15 {dimension_numbers = #tpu.dot_dimension_numbers<[1], [0], [0], [1], [0, 0, 1, 1], [], []>} : vector<16x32xf32>, vector<32x32xf32>, vector<16x32xf32> -> vector<16x32xf32>
    %c0_16 = arith.constant 0 : index
    %c0_17 = arith.constant 0 : index
    %c0_18 = arith.constant 0 : index
    %67 = vector.load %arg6[%c0_16, %c0_17, %c0_18] : memref<1x1x32xf32, #tpu.memory_space<vmem>>, vector<1x1x32xf32>
    %68 = vector.shape_cast %67 : vector<1x1x32xf32> to vector<1x32xf32>
    %69 = vector.broadcast %68 : vector<1x32xf32> to vector<16x32xf32>
    %70 = arith.addf %66, %69 : vector<16x32xf32>
    %71 = arith.addf %3, %70 : vector<16x32xf32>
    %c0_19 = arith.constant 0 : index
    %c0_20 = arith.constant 0 : index
    %c0_21 = arith.constant 0 : index
    %72 = vector.load %arg7[%c0_19, %c0_20, %c0_21] : memref<1x1x32xf32, #tpu.memory_space<vmem>>, vector<1x1x32xf32>
    %73 = vector.shape_cast %72 : vector<1x1x32xf32> to vector<1x32xf32>
    %c0_22 = arith.constant 0 : index
    %c0_23 = arith.constant 0 : index
    %c0_24 = arith.constant 0 : index
    %74 = vector.load %arg8[%c0_22, %c0_23, %c0_24] : memref<1x1x32xf32, #tpu.memory_space<vmem>>, vector<1x1x32xf32>
    %75 = vector.shape_cast %74 : vector<1x1x32xf32> to vector<1x32xf32>
    %cst_25 = arith.constant dense<0.000000e+00> : vector<16xf32>
    %76 = vector.multi_reduction <add>, %71, %cst_25 [1] : vector<16x32xf32> to vector<16xf32>
    %77 = vector.shape_cast %76 : vector<16xf32> to vector<16x1xf32>
    %cst_26 = arith.constant 3.200000e+01 : f32
    %78 = vector.broadcast %cst_26 : f32 to vector<16x1xf32>
    %79 = arith.divf %77, %78 : vector<16x1xf32>
    %80 = arith.mulf %71, %71 : vector<16x32xf32>
    %cst_27 = arith.constant dense<0.000000e+00> : vector<16xf32>
    %81 = vector.multi_reduction <add>, %80, %cst_27 [1] : vector<16x32xf32> to vector<16xf32>
    %82 = vector.shape_cast %81 : vector<16xf32> to vector<16x1xf32>
    %cst_28 = arith.constant 3.200000e+01 : f32
    %83 = vector.broadcast %cst_28 : f32 to vector<16x1xf32>
    %84 = arith.divf %82, %83 : vector<16x1xf32>
    %85 = arith.mulf %79, %79 : vector<16x1xf32>
    %86 = arith.subf %84, %85 : vector<16x1xf32>
    %87 = vector.broadcast %79 : vector<16x1xf32> to vector<16x32xf32>
    %88 = arith.subf %71, %87 : vector<16x32xf32>
    %cst_29 = arith.constant 9.99999974E-6 : f32
    %89 = vector.broadcast %cst_29 : f32 to vector<16x1xf32>
    %90 = arith.addf %86, %89 : vector<16x1xf32>
    %91 = math.rsqrt %90 : vector<16x1xf32>
    %92 = vector.broadcast %91 : vector<16x1xf32> to vector<16x32xf32>
    %93 = arith.mulf %88, %92 : vector<16x32xf32>
    %94 = vector.broadcast %73 : vector<1x32xf32> to vector<16x32xf32>
    %95 = arith.mulf %93, %94 : vector<16x32xf32>
    %96 = vector.broadcast %75 : vector<1x32xf32> to vector<16x32xf32>
    %97 = arith.addf %95, %96 : vector<16x32xf32>
    %c0_30 = arith.constant 0 : index
    %c0_31 = arith.constant 0 : index
    %c0_32 = arith.constant 0 : index
    %98 = vector.load %arg9[%c0_30, %c0_31, %c0_32] : memref<1x32x64xf32, #tpu.memory_space<vmem>>, vector<1x32x64xf32>
    %99 = vector.shape_cast %98 : vector<1x32x64xf32> to vector<32x64xf32>
    %cst_33 = arith.constant dense<0.000000e+00> : vector<16x64xf32>
    %100 = tpu.matmul %97, %99, %cst_33 {dimension_numbers = #tpu.dot_dimension_numbers<[1], [0], [0], [1], [0, 0, 1, 1], [], []>} : vector<16x32xf32>, vector<32x64xf32>, vector<16x64xf32> -> vector<16x64xf32>
    %c0_34 = arith.constant 0 : index
    %c0_35 = arith.constant 0 : index
    %c0_36 = arith.constant 0 : index
    %101 = vector.load %arg10[%c0_34, %c0_35, %c0_36] : memref<1x1x64xf32, #tpu.memory_space<vmem>>, vector<1x1x64xf32>
    %102 = vector.shape_cast %101 : vector<1x1x64xf32> to vector<1x64xf32>
    %103 = vector.broadcast %102 : vector<1x64xf32> to vector<16x64xf32>
    %104 = arith.addf %100, %103 : vector<16x64xf32>
    %cst_37 = arith.constant 0.000000e+00 : f32
    %105 = vector.broadcast %cst_37 : f32 to vector<16x64xf32>
    %106 = arith.maximumf %104, %105 : vector<16x64xf32>
    %c0_38 = arith.constant 0 : index
    %c0_39 = arith.constant 0 : index
    %c0_40 = arith.constant 0 : index
    %107 = vector.load %arg11[%c0_38, %c0_39, %c0_40] : memref<1x64x32xf32, #tpu.memory_space<vmem>>, vector<1x64x32xf32>
    %108 = vector.shape_cast %107 : vector<1x64x32xf32> to vector<64x32xf32>
    %cst_41 = arith.constant dense<0.000000e+00> : vector<16x32xf32>
    %109 = tpu.matmul %106, %108, %cst_41 {dimension_numbers = #tpu.dot_dimension_numbers<[1], [0], [0], [1], [0, 0, 1, 1], [], []>} : vector<16x64xf32>, vector<64x32xf32>, vector<16x32xf32> -> vector<16x32xf32>
    %c0_42 = arith.constant 0 : index
    %c0_43 = arith.constant 0 : index
    %c0_44 = arith.constant 0 : index
    %110 = vector.load %arg12[%c0_42, %c0_43, %c0_44] : memref<1x1x32xf32, #tpu.memory_space<vmem>>, vector<1x1x32xf32>
    %111 = vector.shape_cast %110 : vector<1x1x32xf32> to vector<1x32xf32>
    %112 = vector.broadcast %111 : vector<1x32xf32> to vector<16x32xf32>
    %113 = arith.addf %109, %112 : vector<16x32xf32>
    %114 = arith.addf %97, %113 : vector<16x32xf32>
    %c0_45 = arith.constant 0 : index
    %c0_46 = arith.constant 0 : index
    %c0_47 = arith.constant 0 : index
    %115 = vector.load %arg13[%c0_45, %c0_46, %c0_47] : memref<1x1x32xf32, #tpu.memory_space<vmem>>, vector<1x1x32xf32>
    %116 = vector.shape_cast %115 : vector<1x1x32xf32> to vector<1x32xf32>
    %c0_48 = arith.constant 0 : index
    %c0_49 = arith.constant 0 : index
    %c0_50 = arith.constant 0 : index
    %117 = vector.load %arg14[%c0_48, %c0_49, %c0_50] : memref<1x1x32xf32, #tpu.memory_space<vmem>>, vector<1x1x32xf32>
    %118 = vector.shape_cast %117 : vector<1x1x32xf32> to vector<1x32xf32>
    %cst_51 = arith.constant dense<0.000000e+00> : vector<16xf32>
    %119 = vector.multi_reduction <add>, %114, %cst_51 [1] : vector<16x32xf32> to vector<16xf32>
    %120 = vector.shape_cast %119 : vector<16xf32> to vector<16x1xf32>
    %cst_52 = arith.constant 3.200000e+01 : f32
    %121 = vector.broadcast %cst_52 : f32 to vector<16x1xf32>
    %122 = arith.divf %120, %121 : vector<16x1xf32>
    %123 = arith.mulf %114, %114 : vector<16x32xf32>
    %cst_53 = arith.constant dense<0.000000e+00> : vector<16xf32>
    %124 = vector.multi_reduction <add>, %123, %cst_53 [1] : vector<16x32xf32> to vector<16xf32>
    %125 = vector.shape_cast %124 : vector<16xf32> to vector<16x1xf32>
    %cst_54 = arith.constant 3.200000e+01 : f32
    %126 = vector.broadcast %cst_54 : f32 to vector<16x1xf32>
    %127 = arith.divf %125, %126 : vector<16x1xf32>
    %128 = arith.mulf %122, %122 : vector<16x1xf32>
    %129 = arith.subf %127, %128 : vector<16x1xf32>
    %130 = vector.broadcast %122 : vector<16x1xf32> to vector<16x32xf32>
    %131 = arith.subf %114, %130 : vector<16x32xf32>
    %cst_55 = arith.constant 9.99999974E-6 : f32
    %132 = vector.broadcast %cst_55 : f32 to vector<16x1xf32>
    %133 = arith.addf %129, %132 : vector<16x1xf32>
    %134 = math.rsqrt %133 : vector<16x1xf32>
    %135 = vector.broadcast %134 : vector<16x1xf32> to vector<16x32xf32>
    %136 = arith.mulf %131, %135 : vector<16x32xf32>
    %137 = vector.broadcast %116 : vector<1x32xf32> to vector<16x32xf32>
    %138 = arith.mulf %136, %137 : vector<16x32xf32>
    %139 = vector.broadcast %118 : vector<1x32xf32> to vector<16x32xf32>
    %140 = arith.addf %138, %139 : vector<16x32xf32>
    %c0_56 = arith.constant 0 : index
    %c0_57 = arith.constant 0 : index
    %141 = vector.load %arg18[%c0_56, %c0_57] : memref<16x32xf32, #tpu.memory_space<vmem>>, vector<16x32xf32>
    tpu.vector_store %arg18[%c0_56, %c0_57], %140 {strides = array<i32>} : memref<16x32xf32, #tpu.memory_space<vmem>>, vector<16x32xf32>,
    %c1_i32 = arith.constant 1 : i32
    %142 = arith.cmpi eq, %arg1, %c1_i32 : i32
    %143 = arith.extui %142 : i1 to i32
    %c0_i32_58 = arith.constant 0 : i32
    %144 = arith.cmpi ne, %143, %c0_i32_58 : i32
    scf.if %144 {
      %c0_59 = arith.constant 0 : index
      %c0_60 = arith.constant 0 : index
      %145 = vector.load %arg15[%c0_59, %c0_60] : memref<1x32xf32, #tpu.memory_space<vmem>>, vector<1x32xf32>
      %cst_61 = arith.constant dense<0.000000e+00> : vector<1x16xf32>
      %146 = tpu.matmul %145, %140, %cst_61 {dimension_numbers = #tpu.dot_dimension_numbers<[1], [1], [0], [0], [0, 0, 1, 0], [], []>} : vector<1x32xf32>, vector<16x32xf32>, vector<1x16xf32> -> vector<1x16xf32>
      %c0_62 = arith.constant 0 : index
      %c0_63 = arith.constant 0 : index
      %147 = vector.load %arg16[%c0_62, %c0_63] : memref<1x1xf32, #tpu.memory_space<vmem>>, vector<1x1xf32>
      %148 = vector.broadcast %147 : vector<1x1xf32> to vector<1x16xf32>
      %149 = arith.addf %146, %148 : vector<1x16xf32>
      %150 = vector.shape_cast %149 : vector<1x16xf32> to vector<1x1x16xf32>
      %c0_64 = arith.constant 0 : index
      %c0_65 = arith.constant 0 : index
      %c0_66 = arith.constant 0 : index
      %151 = vector.load %arg17[%c0_64, %c0_65, %c0_66] : memref<1x1x16xf32, #tpu.memory_space<vmem>>, vector<1x1x16xf32>
      tpu.vector_store %arg17[%c0_64, %c0_65, %c0_66], %150 {strides = array<i32>} : memref<1x1x16xf32, #tpu.memory_space<vmem>>, vector<1x1x16xf32>,
    } else {
    }
    return
  }
  func.func @transform_0(%arg0: i32, %arg1: i32) -> (i32, i32) {
    %c0_i32 = arith.constant 0 : i32
    %c0_i32_0 = arith.constant 0 : i32
    return %arg0, %c0_i32 : i32, i32
  }
  func.func @transform_1(%arg0: i32, %arg1: i32) -> (i32, i32, i32) {
    %c0_i32 = arith.constant 0 : i32
    %c0_i32_0 = arith.constant 0 : i32
    %c0_i32_1 = arith.constant 0 : i32
    return %arg1, %c0_i32, %c0_i32_0 : i32, i32, i32
  }
  func.func @transform_2(%arg0: i32, %arg1: i32) -> (i32, i32, i32) {
    %c0_i32 = arith.constant 0 : i32
    %c0_i32_0 = arith.constant 0 : i32
    %c0_i32_1 = arith.constant 0 : i32
    return %arg1, %c0_i32, %c0_i32_0 : i32, i32, i32
  }
  func.func @transform_3(%arg0: i32, %arg1: i32) -> (i32, i32, i32) {
    %c0_i32 = arith.constant 0 : i32
    %c0_i32_0 = arith.constant 0 : i32
    %c0_i32_1 = arith.constant 0 : i32
    return %arg1, %c0_i32, %c0_i32_0 : i32, i32, i32
  }
  func.func @transform_4(%arg0: i32, %arg1: i32) -> (i32, i32, i32) {
    %c0_i32 = arith.constant 0 : i32
    %c0_i32_0 = arith.constant 0 : i32
    %c0_i32_1 = arith.constant 0 : i32
    return %arg1, %c0_i32, %c0_i32_0 : i32, i32, i32
  }
  func.func @transform_5(%arg0: i32, %arg1: i32) -> (i32, i32, i32) {
    %c0_i32 = arith.constant 0 : i32
    %c0_i32_0 = arith.constant 0 : i32
    %c0_i32_1 = arith.constant 0 : i32
    return %arg1, %c0_i32, %c0_i32_0 : i32, i32, i32
  }
  func.func @transform_6(%arg0: i32, %arg1: i32) -> (i32, i32, i32) {
    %c0_i32 = arith.constant 0 : i32
    %c0_i32_0 = arith.constant 0 : i32
    %c0_i32_1 = arith.constant 0 : i32
    return %arg1, %c0_i32, %c0_i32_0 : i32, i32, i32
  }
  func.func @transform_7(%arg0: i32, %arg1: i32) -> (i32, i32, i32) {
    %c0_i32 = arith.constant 0 : i32
    %c0_i32_0 = arith.constant 0 : i32
    %c0_i32_1 = arith.constant 0 : i32
    return %arg1, %c0_i32, %c0_i32_0 : i32, i32, i32
  }
  func.func @transform_8(%arg0: i32, %arg1: i32) -> (i32, i32, i32) {
    %c0_i32 = arith.constant 0 : i32
    %c0_i32_0 = arith.constant 0 : i32
    %c0_i32_1 = arith.constant 0 : i32
    return %arg1, %c0_i32, %c0_i32_0 : i32, i32, i32
  }
  func.func @transform_9(%arg0: i32, %arg1: i32) -> (i32, i32, i32) {
    %c0_i32 = arith.constant 0 : i32
    %c0_i32_0 = arith.constant 0 : i32
    %c0_i32_1 = arith.constant 0 : i32
    return %arg1, %c0_i32, %c0_i32_0 : i32, i32, i32
  }
  func.func @transform_10(%arg0: i32, %arg1: i32) -> (i32, i32, i32) {
    %c0_i32 = arith.constant 0 : i32
    %c0_i32_0 = arith.constant 0 : i32
    %c0_i32_1 = arith.constant 0 : i32
    return %arg1, %c0_i32, %c0_i32_0 : i32, i32, i32
  }
  func.func @transform_11(%arg0: i32, %arg1: i32) -> (i32, i32, i32) {
    %c0_i32 = arith.constant 0 : i32
    %c0_i32_0 = arith.constant 0 : i32
    %c0_i32_1 = arith.constant 0 : i32
    return %arg1, %c0_i32, %c0_i32_0 : i32, i32, i32
  }
  func.func @transform_12(%arg0: i32, %arg1: i32) -> (i32, i32, i32) {
    %c0_i32 = arith.constant 0 : i32
    %c0_i32_0 = arith.constant 0 : i32
    %c0_i32_1 = arith.constant 0 : i32
    return %arg1, %c0_i32, %c0_i32_0 : i32, i32, i32
  }
  func.func @transform_13(%arg0: i32, %arg1: i32) -> (i32, i32) {
    %c0_i32 = arith.constant 0 : i32
    %c0_i32_0 = arith.constant 0 : i32
    %c0_i32_1 = arith.constant 0 : i32
    return %c0_i32, %c0_i32_0 : i32, i32
  }
  func.func @transform_14(%arg0: i32, %arg1: i32) -> (i32, i32) {
    %c0_i32 = arith.constant 0 : i32
    %c0_i32_0 = arith.constant 0 : i32
    %c0_i32_1 = arith.constant 0 : i32
    return %c0_i32, %c0_i32_0 : i32, i32
  }
  func.func @transform_15(%arg0: i32, %arg1: i32) -> (i32, i32, i32) {
    %c0_i32 = arith.constant 0 : i32
    %c0_i32_0 = arith.constant 0 : i32
    %c0_i32_1 = arith.constant 0 : i32
    return %arg0, %c0_i32, %c0_i32_0 : i32, i32, i32
  }
}

</mosaic_0001>

<llo_original>
// kernel: tpu_custom_call.1
$region0: #{tpu_custom_call.1}
  #allocation0 [shape = 'u32[]', space=smem, size = 0x4, offset = 0x4, fixed_abs, tag = 'smem constant byte address 0x4 - core index']
  #allocation1 [shape = 'u32[72,128]{1,0:T(1,128)}', space=vmem, size = 0x9000, scoped, tag = 'internal scratch']
  #allocation2 [shape = 'f32[16,32]{1,0:T(8,128)}', space=vmem, size = 0x2000, scoped, tag = 'scratch operand']
  #allocation3 [shape = 'f32[1,1]{1,0:T(1,128)S(1)}', space=vmem, size = 0x200, scoped, tag = 'scoped memory for tpu_custom_call.1']
  %s0 = inlined_call_operand.hbm [shape: f32[16,32], index: 0, kind: input, shape index: {}]
  %s1 = inlined_call_operand.vmem [shape: f32[2,32,96], index: 1, kind: input, shape index: {}]
  %s2 = inlined_call_operand.vmem [shape: f32[2,1,96], index: 2, kind: input, shape index: {}]
  %s3 = inlined_call_operand.vmem [shape: f32[2,32,32], index: 3, kind: input, shape index: {}]
  %s4 = inlined_call_operand.vmem [shape: f32[2,1,32], index: 4, kind: input, shape index: {}]
  %s5 = inlined_call_operand.hbm [shape: f32[2,1,32], index: 5, kind: input, shape index: {}]
  %s6 = inlined_call_operand.vmem [shape: f32[2,1,32], index: 6, kind: input, shape index: {}]
  %s7 = inlined_call_operand.vmem [shape: f32[2,32,64], index: 7, kind: input, shape index: {}]
  %s8 = inlined_call_operand.vmem [shape: f32[2,1,64], index: 8, kind: input, shape index: {}]
  %s9 = inlined_call_operand.vmem [shape: f32[2,64,32], index: 9, kind: input, shape index: {}]
  %s10 = inlined_call_operand.vmem [shape: f32[2,1,32], index: 10, kind: input, shape index: {}]
  %s11 = inlined_call_operand.hbm [shape: f32[2,1,32], index: 11, kind: input, shape index: {}]
  %s12 = inlined_call_operand.hbm [shape: f32[2,1,32], index: 12, kind: input, shape index: {}]
  %s13 = inlined_call_operand.vmem [shape: f32[1,32], index: 13, kind: input, shape index: {}]
  %s14 = inlined_call_operand.<no memory space> [shape: f32[1,1], index: 14, kind: input, shape index: {}]
  %s15 = inlined_call_operand.hbm [shape: f32[1,1,16], index: 15, kind: output, shape index: {}]
  %s16 = sld [smem:[#allocation0]]
  $region117: #{tpu_custom_call.1} parent=0
    _
  %s18 = ssub.s32 1, %s16
  %s19 = scalar_select 0, %s18, %s16
  %v20 = vstv %s14
  %21 = vst [vmem:[#allocation3] sm:$0x1] %v20
  $region1: #{tpu_custom_call.1} parent=0
    #allocation4 [shape = 'u8[8192]{0}', space=vmem, size = 0x2000, scoped, tag = 'input window, operand 0, single buffered']
    #allocation5 [shape = 's32[2]{0}', space=sflag, size = 0x8, scoped, tag = 'scoped memory for tpu_custom_call.1']
    #allocation6 [shape = 's32[2]{0}', space=sflag, size = 0x8, scoped, tag = 'scoped memory for tpu_custom_call.1']
    #allocation7 [shape = 'u8[1024]{0}', space=vmem, size = 0x400, scoped, tag = 'input window, operand 5']
    #allocation8 [shape = 's32[2]{0}', space=sflag, size = 0x8, scoped, tag = 'scoped memory for tpu_custom_call.1']
    #allocation9 [shape = 'u8[1024]{0}', space=vmem, size = 0x400, scoped, tag = 'input window, operand 11']
    #allocation10 [shape = 'u8[1024]{0}', space=vmem, size = 0x400, scoped, tag = 'input window, operand 12']
    #allocation11 [shape = 's32[2]{0}', space=sflag, size = 0x8, scoped, tag = 'scoped memory for tpu_custom_call.1']
    #allocation12 [shape = 'u8[512]{0}', space=vmem, size = 0x400, scoped, tag = 'output window, operand 0, single buffered']
    %22 = vsyncpa [#allocation5], 0
    %23 = vsyncpa [#allocation8], 0
    %s24 = scalar_lea.sflag [#allocation8], 1
    %25 = vsyncpa %s24, 0
    %26 = vsyncpa [#allocation11], 0
    %s27 = scalar_lea.sflag [#allocation11], 1
    %28 = vsyncpa %s27, 0
    %29 = vsyncpa [#allocation6], 0
    loop: start=0, step=1, limit=4
    $region2: #{tpu_custom_call.1} parent=1 // loop_pre_header
      _
    $region3: #{tpu_custom_call.1} parent=1 // loop_header
      %s31 = sphi 0, %s35
      %p32 = scmp.ge.s32.totalorder %s31, 4
      %s38 = sphi 0, %s50
      %s39 = sphi 0, %s46
      %s40 = sphi 0, %s38
      %s41 = sphi 0, %s39
      %s42 = sphi 0, %s40
      %s43 = sphi 0, %s41
      %s53 = sphi 0, %s55
      %s56 = sphi 0, %s53
      %s57 = sphi 0, %s56
      %s73 = sphi 0, %s57
      %s79 = sphi 0, %s81
      %s82 = sphi 0, %s79
      %s83 = sphi 0, %s82
      %s99 = sphi 0, %s83
      %s105 = sphi 0, %s107
      %s108 = sphi 0, %s105
      %s109 = sphi 0, %s108
      %s125 = sphi 0, %s109
      %s131 = sphi 0, %s133
      %s134 = sphi 0, %s131
      %s135 = sphi 0, %s134
      %s151 = sphi 0, %s135
      %s157 = sphi 0, %s159
      %s160 = sphi 0, %s157
      %s161 = sphi 0, %s160
      %s177 = sphi 0, %s161
      %s183 = sphi 0, %s185
      %s186 = sphi 0, %s183
      %s187 = sphi 0, %s186
      %s203 = sphi 0, %s187
      %s209 = sphi 0, %s211
      %s212 = sphi 0, %s209
      %s213 = sphi 0, %s212
      %s229 = sphi 0, %s213
      %s235 = sphi 0, %s237
      %s238 = sphi 0, %s235
      %s239 = sphi 0, %s238
      %s255 = sphi 0, %s239
      %s261 = sphi 0, %s263
      %s264 = sphi 0, %s261
      %s265 = sphi 0, %s264
      %s281 = sphi 0, %s265
      %s287 = sphi 0, %s289
      %s290 = sphi 0, %s287
      %s291 = sphi 0, %s290
      %s307 = sphi 0, %s291
      %s313 = sphi 0, %s315
      %s316 = sphi 0, %s313
      %s317 = sphi 0, %s316
      %s333 = sphi 0, %s317
      %s339 = sphi 0, %s341
      %s342 = sphi 0, %s339
      %s343 = sphi 0, %s342
      %s359 = sphi 0, %s343
      %s365 = sphi 0, %s367
      %s368 = sphi 0, %s365
      %s369 = sphi 0, %s368
      %s385 = sphi 0, %s369
      %s389 = sphi 0, %s389
      %s391 = sphi 0, %s389
      %s392 = sphi 0, %s391
      %s406 = sphi 0, %s392
      %s410 = sphi 0, %s410
      %s412 = sphi 0, %s410
      %s413 = sphi 0, %s412
      %s427 = sphi 0, %s413
      %s433 = sphi 0, %s435
      %s436 = sphi 0, %s433
      %s437 = sphi 0, %s436
      %s453 = sphi 0, %s437
    $region4: #{tpu_custom_call.1} parent=1 // loop_header_branch
      %34 = sbr.rel (%p32) target = $region8
    $region5: #{tpu_custom_call.1} parent=1 // loop_body
      %s36 = ssub.s32 %s31, 1
      %s37 = ssub.s32 %s31, 2
      %s44 = sadd.s32 1, %s39
      %p45 = scmp.ge.s32.totalorder %s44, 2
      %s46 = scalar_select %p45, 0, %s44
      %s47 = sadd.s32 1, %s38
      %s48 = scalar_select %p45, %s47, %s38
      %p49 = scmp.ge.s32.totalorder %s48, 1
      %s50 = scalar_select %p49, 0, %s48
      %s51 = ssub.s32 %s38, %s50
      %p52 = scmp.eq.s32.totalorder %s51, 0
      %s54 = sadd.s32 %s53, 1
      %s55 = scalar_select %p52, %s53, %s54
      %p58 = pneg %p52
      %p59 = scmp.eq.s32.totalorder %s31, 1
      %p60 = por %p58, %p59
      %p61 = scmp.ne.s32.totalorder %s53, %s56
      %p62 = scmp.eq.s32.totalorder %s31, 0
      %p63 = por %p61, %p62
      %p64 = scmp.ne.s32.totalorder %s53, %s56
      %p65 = scmp.eq.s32.totalorder %s36, 1
      %p66 = por %p64, %p65
      %p67 = scmp.ne.s32.totalorder %s56, %s57
      %p68 = scmp.eq.s32.totalorder %s36, 0
      %p69 = por %p67, %p68
      %p70 = scmp.ne.s32.totalorder %s56, %s57
      %p71 = scmp.eq.s32.totalorder %s37, 1
      %p72 = por %p70, %p71
      %p74 = scmp.ne.s32.totalorder %s57, %s73
      %p75 = scmp.eq.s32.totalorder %s37, 0
      %p76 = por %p74, %p75
      %s77 = ssub.s32 %s39, %s46
      %p78 = scmp.eq.s32.totalorder %s77, 0
      %s80 = sadd.s32 %s79, 1
      %s81 = scalar_select %p78, %s79, %s80
      %p84 = pneg %p78
      %p85 = scmp.eq.s32.totalorder %s31, 1
      %p86 = por %p84, %p85
      %p87 = scmp.ne.s32.totalorder %s79, %s82
      %p88 = scmp.eq.s32.totalorder %s31, 0
      %p89 = por %p87, %p88
      %p90 = scmp.ne.s32.totalorder %s79, %s82
      %p91 = scmp.eq.s32.totalorder %s36, 1
      %p92 = por %p90, %p91
      %p93 = scmp.ne.s32.totalorder %s82, %s83
      %p94 = scmp.eq.s32.totalorder %s36, 0
      %p95 = por %p93, %p94
      %p96 = scmp.ne.s32.totalorder %s82, %s83
      %p97 = scmp.eq.s32.totalorder %s37, 1
      %p98 = por %p96, %p97
      %p100 = scmp.ne.s32.totalorder %s83, %s99
      %p101 = scmp.eq.s32.totalorder %s37, 0
      %p102 = por %p100, %p101
      %s103 = ssub.s32 %s39, %s46
      %p104 = scmp.eq.s32.totalorder %s103, 0
      %s106 = sadd.s32 %s105, 1
      %s107 = scalar_select %p104, %s105, %s106
      %p110 = pneg %p104
      %p111 = scmp.eq.s32.totalorder %s31, 1
      %p112 = por %p110, %p111
      %p113 = scmp.ne.s32.totalorder %s105, %s108
      %p114 = scmp.eq.s32.totalorder %s31, 0
      %p115 = por %p113, %p114
      %p116 = scmp.ne.s32.totalorder %s105, %s108
      %p117 = scmp.eq.s32.totalorder %s36, 1
      %p118 = por %p116, %p117
      %p119 = scmp.ne.s32.totalorder %s108, %s109
      %p120 = scmp.eq.s32.totalorder %s36, 0
      %p121 = por %p119, %p120
      %p122 = scmp.ne.s32.totalorder %s108, %s109
      %p123 = scmp.eq.s32.totalorder %s37, 1
      %p124 = por %p122, %p123
      %p126 = scmp.ne.s32.totalorder %s109, %s125
      %p127 = scmp.eq.s32.totalorder %s37, 0
      %p128 = por %p126, %p127
      %s129 = ssub.s32 %s39, %s46
      %p130 = scmp.eq.s32.totalorder %s129, 0
      %s132 = sadd.s32 %s131, 1
      %s133 = scalar_select %p130, %s131, %s132
      %p136 = pneg %p130
      %p137 = scmp.eq.s32.totalorder %s31, 1
      %p138 = por %p136, %p137
      %p139 = scmp.ne.s32.totalorder %s131, %s134
      %p140 = scmp.eq.s32.totalorder %s31, 0
      %p141 = por %p139, %p140
      %p142 = scmp.ne.s32.totalorder %s131, %s134
      %p143 = scmp.eq.s32.totalorder %s36, 1
      %p144 = por %p142, %p143
      %p145 = scmp.ne.s32.totalorder %s134, %s135
      %p146 = scmp.eq.s32.totalorder %s36, 0
      %p147 = por %p145, %p146
      %p148 = scmp.ne.s32.totalorder %s134, %s135
      %p149 = scmp.eq.s32.totalorder %s37, 1
      %p150 = por %p148, %p149
      %p152 = scmp.ne.s32.totalorder %s135, %s151
      %p153 = scmp.eq.s32.totalorder %s37, 0
      %p154 = por %p152, %p153
      %s155 = ssub.s32 %s39, %s46
      %p156 = scmp.eq.s32.totalorder %s155, 0
      %s158 = sadd.s32 %s157, 1
      %s159 = scalar_select %p156, %s157, %s158
      %p162 = pneg %p156
      %p163 = scmp.eq.s32.totalorder %s31, 1
      %p164 = por %p162, %p163
      %p165 = scmp.ne.s32.totalorder %s157, %s160
      %p166 = scmp.eq.s32.totalorder %s31, 0
      %p167 = por %p165, %p166
      %p168 = scmp.ne.s32.totalorder %s157, %s160
      %p169 = scmp.eq.s32.totalorder %s36, 1
      %p170 = por %p168, %p169
      %p171 = scmp.ne.s32.totalorder %s160, %s161
      %p172 = scmp.eq.s32.totalorder %s36, 0
      %p173 = por %p171, %p172
      %p174 = scmp.ne.s32.totalorder %s160, %s161
      %p175 = scmp.eq.s32.totalorder %s37, 1
      %p176 = por %p174, %p175
      %p178 = scmp.ne.s32.totalorder %s161, %s177
      %p179 = scmp.eq.s32.totalorder %s37, 0
      %p180 = por %p178, %p179
      %s181 = ssub.s32 %s39, %s46
      %p182 = scmp.eq.s32.totalorder %s181, 0
      %s184 = sadd.s32 %s183, 1
      %s185 = scalar_select %p182, %s183, %s184
      %p188 = pneg %p182
      %p189 = scmp.eq.s32.totalorder %s31, 1
      %p190 = por %p188, %p189
      %p191 = scmp.ne.s32.totalorder %s183, %s186
      %p192 = scmp.eq.s32.totalorder %s31, 0
      %p193 = por %p191, %p192
      %p194 = scmp.ne.s32.totalorder %s183, %s186
      %p195 = scmp.eq.s32.totalorder %s36, 1
      %p196 = por %p194, %p195
      %p197 = scmp.ne.s32.totalorder %s186, %s187
      %p198 = scmp.eq.s32.totalorder %s36, 0
      %p199 = por %p197, %p198
      %p200 = scmp.ne.s32.totalorder %s186, %s187
      %p201 = scmp.eq.s32.totalorder %s37, 1
      %p202 = por %p200, %p201
      %p204 = scmp.ne.s32.totalorder %s187, %s203
      %p205 = scmp.eq.s32.totalorder %s37, 0
      %p206 = por %p204, %p205
      %s207 = ssub.s32 %s39, %s46
      %p208 = scmp.eq.s32.totalorder %s207, 0
      %s210 = sadd.s32 %s209, 1
      %s211 = scalar_select %p208, %s209, %s210
      %p214 = pneg %p208
      %p215 = scmp.eq.s32.totalorder %s31, 1
      %p216 = por %p214, %p215
      %p217 = scmp.ne.s32.totalorder %s209, %s212
      %p218 = scmp.eq.s32.totalorder %s31, 0
      %p219 = por %p217, %p218
      %p220 = scmp.ne.s32.totalorder %s209, %s212
      %p221 = scmp.eq.s32.totalorder %s36, 1
      %p222 = por %p220, %p221
      %p223 = scmp.ne.s32.totalorder %s212, %s213
      %p224 = scmp.eq.s32.totalorder %s36, 0
      %p225 = por %p223, %p224
      %p226 = scmp.ne.s32.totalorder %s212, %s213
      %p227 = scmp.eq.s32.totalorder %s37, 1
      %p228 = por %p226, %p227
      %p230 = scmp.ne.s32.totalorder %s213, %s229
      %p231 = scmp.eq.s32.totalorder %s37, 0
      %p232 = por %p230, %p231
      %s233 = ssub.s32 %s39, %s46
      %p234 = scmp.eq.s32.totalorder %s233, 0
      %s236 = sadd.s32 %s235, 1
      %s237 = scalar_select %p234, %s235, %s236
      %p240 = pneg %p234
      %p241 = scmp.eq.s32.totalorder %s31, 1
      %p242 = por %p240, %p241
      %p243 = scmp.ne.s32.totalorder %s235, %s238
      %p244 = scmp.eq.s32.totalorder %s31, 0
      %p245 = por %p243, %p244
      %p246 = scmp.ne.s32.totalorder %s235, %s238
      %p247 = scmp.eq.s32.totalorder %s36, 1
      %p248 = por %p246, %p247
      %p249 = scmp.ne.s32.totalorder %s238, %s239
      %p250 = scmp.eq.s32.totalorder %s36, 0
      %p251 = por %p249, %p250
      %p252 = scmp.ne.s32.totalorder %s238, %s239
      %p253 = scmp.eq.s32.totalorder %s37, 1
      %p254 = por %p252, %p253
      %p256 = scmp.ne.s32.totalorder %s239, %s255
      %p257 = scmp.eq.s32.totalorder %s37, 0
      %p258 = por %p256, %p257
      %s259 = ssub.s32 %s39, %s46
      %p260 = scmp.eq.s32.totalorder %s259, 0
      %s262 = sadd.s32 %s261, 1
      %s263 = scalar_select %p260, %s261, %s262
      %p266 = pneg %p260
      %p267 = scmp.eq.s32.totalorder %s31, 1
      %p268 = por %p266, %p267
      %p269 = scmp.ne.s32.totalorder %s261, %s264
      %p270 = scmp.eq.s32.totalorder %s31, 0
      %p271 = por %p269, %p270
      %p272 = scmp.ne.s32.totalorder %s261, %s264
      %p273 = scmp.eq.s32.totalorder %s36, 1
      %p274 = por %p272, %p273
      %p275 = scmp.ne.s32.totalorder %s264, %s265
      %p276 = scmp.eq.s32.totalorder %s36, 0
      %p277 = por %p275, %p276
      %p278 = scmp.ne.s32.totalorder %s264, %s265
      %p279 = scmp.eq.s32.totalorder %s37, 1
      %p280 = por %p278, %p279
      %p282 = scmp.ne.s32.totalorder %s265, %s281
      %p283 = scmp.eq.s32.totalorder %s37, 0
      %p284 = por %p282, %p283
      %s285 = ssub.s32 %s39, %s46
      %p286 = scmp.eq.s32.totalorder %s285, 0
      %s288 = sadd.s32 %s287, 1
      %s289 = scalar_select %p286, %s287, %s288
      %p292 = pneg %p286
      %p293 = scmp.eq.s32.totalorder %s31, 1
      %p294 = por %p292, %p293
      %p295 = scmp.ne.s32.totalorder %s287, %s290
      %p296 = scmp.eq.s32.totalorder %s31, 0
      %p297 = por %p295, %p296
      %p298 = scmp.ne.s32.totalorder %s287, %s290
      %p299 = scmp.eq.s32.totalorder %s36, 1
      %p300 = por %p298, %p299
      %p301 = scmp.ne.s32.totalorder %s290, %s291
      %p302 = scmp.eq.s32.totalorder %s36, 0
      %p303 = por %p301, %p302
      %p304 = scmp.ne.s32.totalorder %s290, %s291
      %p305 = scmp.eq.s32.totalorder %s37, 1
      %p306 = por %p304, %p305
      %p308 = scmp.ne.s32.totalorder %s291, %s307
      %p309 = scmp.eq.s32.totalorder %s37, 0
      %p310 = por %p308, %p309
      %s311 = ssub.s32 %s39, %s46
      %p312 = scmp.eq.s32.totalorder %s311, 0
      %s314 = sadd.s32 %s313, 1
      %s315 = scalar_select %p312, %s313, %s314
      %p318 = pneg %p312
      %p319 = scmp.eq.s32.totalorder %s31, 1
      %p320 = por %p318, %p319
      %p321 = scmp.ne.s32.totalorder %s313, %s316
      %p322 = scmp.eq.s32.totalorder %s31, 0
      %p323 = por %p321, %p322
      %p324 = scmp.ne.s32.totalorder %s313, %s316
      %p325 = scmp.eq.s32.totalorder %s36, 1
      %p326 = por %p324, %p325
      %p327 = scmp.ne.s32.totalorder %s316, %s317
      %p328 = scmp.eq.s32.totalorder %s36, 0
      %p329 = por %p327, %p328
      %p330 = scmp.ne.s32.totalorder %s316, %s317
      %p331 = scmp.eq.s32.totalorder %s37, 1
      %p332 = por %p330, %p331
      %p334 = scmp.ne.s32.totalorder %s317, %s333
      %p335 = scmp.eq.s32.totalorder %s37, 0
      %p336 = por %p334, %p335
      %s337 = ssub.s32 %s39, %s46
      %p338 = scmp.eq.s32.totalorder %s337, 0
      %s340 = sadd.s32 %s339, 1
      %s341 = scalar_select %p338, %s339, %s340
      %p344 = pneg %p338
      %p345 = scmp.eq.s32.totalorder %s31, 1
      %p346 = por %p344, %p345
      %p347 = scmp.ne.s32.totalorder %s339, %s342
      %p348 = scmp.eq.s32.totalorder %s31, 0
      %p349 = por %p347, %p348
      %p350 = scmp.ne.s32.totalorder %s339, %s342
      %p351 = scmp.eq.s32.totalorder %s36, 1
      %p352 = por %p350, %p351
      %p353 = scmp.ne.s32.totalorder %s342, %s343
      %p354 = scmp.eq.s32.totalorder %s36, 0
      %p355 = por %p353, %p354
      %p356 = scmp.ne.s32.totalorder %s342, %s343
      %p357 = scmp.eq.s32.totalorder %s37, 1
      %p358 = por %p356, %p357
      %p360 = scmp.ne.s32.totalorder %s343, %s359
      %p361 = scmp.eq.s32.totalorder %s37, 0
      %p362 = por %p360, %p361
      %s363 = ssub.s32 %s39, %s46
      %p364 = scmp.eq.s32.totalorder %s363, 0
      %s366 = sadd.s32 %s365, 1
      %s367 = scalar_select %p364, %s365, %s366
      %p370 = pneg %p364
      %p371 = scmp.eq.s32.totalorder %s31, 1
      %p372 = por %p370, %p371
      %p373 = scmp.ne.s32.totalorder %s365, %s368
      %p374 = scmp.eq.s32.totalorder %s31, 0
      %p375 = por %p373, %p374
      %p376 = scmp.ne.s32.totalorder %s365, %s368
      %p377 = scmp.eq.s32.totalorder %s36, 1
      %p378 = por %p376, %p377
      %p379 = scmp.ne.s32.totalorder %s368, %s369
      %p380 = scmp.eq.s32.totalorder %s36, 0
      %p381 = por %p379, %p380
      %p382 = scmp.ne.s32.totalorder %s368, %s369
      %p383 = scmp.eq.s32.totalorder %s37, 1
      %p384 = por %p382, %p383
      %p386 = scmp.ne.s32.totalorder %s369, %s385
      %p387 = scmp.eq.s32.totalorder %s37, 0
      %p388 = por %p386, %p387
      %s390 = sadd.s32 %s389, 1
      %p393 = scmp.eq.s32.totalorder %s31, 1
      %p394 = scmp.ne.s32.totalorder %s389, %s391
      %p395 = scmp.eq.s32.totalorder %s31, 0
      %p396 = por %p394, %p395
      %p397 = scmp.ne.s32.totalorder %s389, %s391
      %p398 = scmp.eq.s32.totalorder %s36, 1
      %p399 = por %p397, %p398
      %p400 = scmp.ne.s32.totalorder %s391, %s392
      %p401 = scmp.eq.s32.totalorder %s36, 0
      %p402 = por %p400, %p401
      %p403 = scmp.ne.s32.totalorder %s391, %s392
      %p404 = scmp.eq.s32.totalorder %s37, 1
      %p405 = por %p403, %p404
      %p407 = scmp.ne.s32.totalorder %s392, %s406
      %p408 = scmp.eq.s32.totalorder %s37, 0
      %p409 = por %p407, %p408
      %s411 = sadd.s32 %s410, 1
      %p414 = scmp.eq.s32.totalorder %s31, 1
      %p415 = scmp.ne.s32.totalorder %s410, %s412
      %p416 = scmp.eq.s32.totalorder %s31, 0
      %p417 = por %p415, %p416
      %p418 = scmp.ne.s32.totalorder %s410, %s412
      %p419 = scmp.eq.s32.totalorder %s36, 1
      %p420 = por %p418, %p419
      %p421 = scmp.ne.s32.totalorder %s412, %s413
      %p422 = scmp.eq.s32.totalorder %s36, 0
      %p423 = por %p421, %p422
      %p424 = scmp.ne.s32.totalorder %s412, %s413
      %p425 = scmp.eq.s32.totalorder %s37, 1
      %p426 = por %p424, %p425
      %p428 = scmp.ne.s32.totalorder %s413, %s427
      %p429 = scmp.eq.s32.totalorder %s37, 0
      %p430 = por %p428, %p429
      %s431 = ssub.s32 %s38, %s50
      %p432 = scmp.eq.s32.totalorder %s431, 0
      %s434 = sadd.s32 %s433, 1
      %s435 = scalar_select %p432, %s433, %s434
      %p438 = pneg %p432
      %p439 = scmp.eq.s32.totalorder %s31, 1
      %p440 = por %p438, %p439
      %p441 = scmp.ne.s32.totalorder %s433, %s436
      %p442 = scmp.eq.s32.totalorder %s31, 0
      %p443 = por %p441, %p442
      %p444 = scmp.ne.s32.totalorder %s433, %s436
      %p445 = scmp.eq.s32.totalorder %s36, 1
      %p446 = por %p444, %p445
      %p447 = scmp.ne.s32.totalorder %s436, %s437
      %p448 = scmp.eq.s32.totalorder %s36, 0
      %p449 = por %p447, %p448
      %p450 = scmp.ne.s32.totalorder %s436, %s437
      %p451 = scmp.eq.s32.totalorder %s37, 1
      %p452 = por %p450, %p451
      %p454 = scmp.ne.s32.totalorder %s437, %s453
      %p455 = scmp.eq.s32.totalorder %s37, 0
      %p456 = por %p454, %p455
      %p457 = scmp.le.s32.totalorder 1, %s31
      %p458 = scmp.lt.s32.totalorder %s31, 3
      %p459 = pnand %p457, %p458
      %p460 = pneg %p459
      // Predicated region
      $region9: #{tpu_custom_call.1} parent=5 // pred_check
        _
      $region10: #{tpu_custom_call.1} parent=5 // pred_check_branch
        %462 = sbr.rel (%p459) target = $region12
      $region11: #{tpu_custom_call.1} parent=5 // pred_region
        %s463 = ssub.s32 %s31, 1
        // Predicated region
        $region13: #{tpu_custom_call.1} parent=11 // pred_check
          %p464 = pneg %p69
        $region14: #{tpu_custom_call.1} parent=11 // pred_check_branch
          %466 = sbr.rel (%p464) target = $region16
        $region15: #{tpu_custom_call.1} parent=11 // pred_region
          %s467 = smul.u32 2, %s40
          %469 = vsyncadd [#allocation5], 0
          %s470 = smul.addr %s467, 8
          %s471 = scalar_lea.hbm %s0, %s470
          %s472 = sshll.u32 %s471, 4
          %s473 = int_to_ptr.hbm [resolvable:$true] %s472
          %s474 = sshll.u32 [#allocation4], 4
          %s475 = int_to_ptr.vmem [resolvable:$true] %s474
          %480 = dma.hbm_to_vmem [thread:$0]  %s473, 256, %s475, [#allocation5], 128, 128, 8
        $region16: #{tpu_custom_call.1} parent=11 // pred_fallthru
          _
        // Predicated region
        $region17: #{tpu_custom_call.1} parent=11 // pred_check
          %p481 = pneg %p402
        $region18: #{tpu_custom_call.1} parent=11 // pred_check_branch
          %483 = sbr.rel (%p481) target = $region20
        $region19: #{tpu_custom_call.1} parent=11 // pred_region
          _
        $region20: #{tpu_custom_call.1} parent=11 // pred_fallthru
          _
        // Predicated region
        $region21: #{tpu_custom_call.1} parent=11 // pred_check
          %p484 = pneg %p423
        $region22: #{tpu_custom_call.1} parent=11 // pred_check_branch
          %486 = sbr.rel (%p484) target = $region24
        $region23: #{tpu_custom_call.1} parent=11 // pred_region
          _
        $region24: #{tpu_custom_call.1} parent=11 // pred_fallthru
          _
      $region12: #{tpu_custom_call.1} parent=5 // pred_fallthru
        _
      %p487 = scmp.lt.s32.totalorder %s31, 2
      // Predicated region
      $region25: #{tpu_custom_call.1} parent=5 // pred_check
        %p488 = pneg %p487
      $region26: #{tpu_custom_call.1} parent=5 // pred_check_branch
        %490 = sbr.rel (%p488) target = $region28
      $region27: #{tpu_custom_call.1} parent=5 // pred_region
        // Predicated region
        $region29: #{tpu_custom_call.1} parent=27 // pred_check
          %p491 = pneg %p89
        $region30: #{tpu_custom_call.1} parent=27 // pred_check_branch
          %493 = sbr.rel (%p491) target = $region32
        $region31: #{tpu_custom_call.1} parent=27 // pred_region
          %p494 = scmp.lt.s32.totalorder %s39, 1
          %s495 = scalar_select %p494, %s39, 1
          %s496 = smul.addr %s495, 4
          %s497 = smul.addr %s496, 8
          %s498 = scalar_lea.vmem %s1, %s497
        $region32: #{tpu_custom_call.1} parent=27 // pred_fallthru
          _
        // Predicated region
        $region33: #{tpu_custom_call.1} parent=27 // pred_check
          %p499 = pneg %p115
        $region34: #{tpu_custom_call.1} parent=27 // pred_check_branch
          %501 = sbr.rel (%p499) target = $region36
        $region35: #{tpu_custom_call.1} parent=27 // pred_region
          %p502 = scmp.lt.s32.totalorder %s39, 1
          %s503 = scalar_select %p502, %s39, 1
          %s504 = scalar_lea.vmem %s2, %s503
        $region36: #{tpu_custom_call.1} parent=27 // pred_fallthru
          _
        // Predicated region
        $region37: #{tpu_custom_call.1} parent=27 // pred_check
          %p505 = pneg %p141
        $region38: #{tpu_custom_call.1} parent=27 // pred_check_branch
          %507 = sbr.rel (%p505) target = $region40
        $region39: #{tpu_custom_call.1} parent=27 // pred_region
          %p508 = scmp.lt.s32.totalorder %s39, 1
          %s509 = scalar_select %p508, %s39, 1
          %s510 = smul.addr %s509, 4
          %s511 = smul.addr %s510, 8
          %s512 = scalar_lea.vmem %s3, %s511
        $region40: #{tpu_custom_call.1} parent=27 // pred_fallthru
          _
        // Predicated region
        $region41: #{tpu_custom_call.1} parent=27 // pred_check
          %p513 = pneg %p167
        $region42: #{tpu_custom_call.1} parent=27 // pred_check_branch
          %515 = sbr.rel (%p513) target = $region44
        $region43: #{tpu_custom_call.1} parent=27 // pred_region
          %p516 = scmp.lt.s32.totalorder %s39, 1
          %s517 = scalar_select %p516, %s39, 1
          %s518 = scalar_lea.vmem %s4, %s517
        $region44: #{tpu_custom_call.1} parent=27 // pred_fallthru
          _
        // Predicated region
        $region45: #{tpu_custom_call.1} parent=27 // pred_check
          %p519 = pneg %p193
        $region46: #{tpu_custom_call.1} parent=27 // pred_check_branch
          %521 = sbr.rel (%p519) target = $region48
        $region47: #{tpu_custom_call.1} parent=27 // pred_region
          %s522 = sand.u32 %s31, 1
          %s523 = scalar_lea.sflag [#allocation8], %s522
          %s524 = sand.u32 %s183, 1
          %s525 = scalar_lea.vmem [#allocation7], %s524
          %527 = vsyncadd %s523, 0
          %s528 = scalar_lea.hbm %s5, %s39
          %s530 = sshll.u32 %s528, 4
          %s531 = int_to_ptr.hbm [resolvable:$true] %s530
          %s532 = sshll.u32 %s525, 4
          %s533 = int_to_ptr.vmem [resolvable:$true] %s532
          %535 = dma.hbm_to_vmem [thread:$0]  %s531, 16, %s533, %s523
        $region48: #{tpu_custom_call.1} parent=27 // pred_fallthru
          _
        // Predicated region
        $region49: #{tpu_custom_call.1} parent=27 // pred_check
          %p536 = pneg %p219
        $region50: #{tpu_custom_call.1} parent=27 // pred_check_branch
          %538 = sbr.rel (%p536) target = $region52
        $region51: #{tpu_custom_call.1} parent=27 // pred_region
          %p539 = scmp.lt.s32.totalorder %s39, 1
          %s540 = scalar_select %p539, %s39, 1
          %s541 = scalar_lea.vmem %s6, %s540
        $region52: #{tpu_custom_call.1} parent=27 // pred_fallthru
          _
        // Predicated region
        $region53: #{tpu_custom_call.1} parent=27 // pred_check
          %p542 = pneg %p245
        $region54: #{tpu_custom_call.1} parent=27 // pred_check_branch
          %544 = sbr.rel (%p542) target = $region56
        $region55: #{tpu_custom_call.1} parent=27 // pred_region
          %p545 = scmp.lt.s32.totalorder %s39, 1
          %s546 = scalar_select %p545, %s39, 1
          %s547 = smul.addr %s546, 4
          %s548 = smul.addr %s547, 8
          %s549 = scalar_lea.vmem %s7, %s548
        $region56: #{tpu_custom_call.1} parent=27 // pred_fallthru
          _
        // Predicated region
        $region57: #{tpu_custom_call.1} parent=27 // pred_check
          %p550 = pneg %p271
        $region58: #{tpu_custom_call.1} parent=27 // pred_check_branch
          %552 = sbr.rel (%p550) target = $region60
        $region59: #{tpu_custom_call.1} parent=27 // pred_region
          %p553 = scmp.lt.s32.totalorder %s39, 1
          %s554 = scalar_select %p553, %s39, 1
          %s555 = scalar_lea.vmem %s8, %s554
        $region60: #{tpu_custom_call.1} parent=27 // pred_fallthru
          _
        // Predicated region
        $region61: #{tpu_custom_call.1} parent=27 // pred_check
          %p556 = pneg %p297
        $region62: #{tpu_custom_call.1} parent=27 // pred_check_branch
          %558 = sbr.rel (%p556) target = $region64
        $region63: #{tpu_custom_call.1} parent=27 // pred_region
          %p559 = scmp.lt.s32.totalorder %s39, 1
          %s560 = scalar_select %p559, %s39, 1
          %s561 = smul.addr %s560, 8
          %s562 = smul.addr %s561, 8
          %s563 = scalar_lea.vmem %s9, %s562
        $region64: #{tpu_custom_call.1} parent=27 // pred_fallthru
          _
        // Predicated region
        $region65: #{tpu_custom_call.1} parent=27 // pred_check
          %p564 = pneg %p323
        $region66: #{tpu_custom_call.1} parent=27 // pred_check_branch
          %566 = sbr.rel (%p564) target = $region68
        $region67: #{tpu_custom_call.1} parent=27 // pred_region
          %p567 = scmp.lt.s32.totalorder %s39, 1
          %s568 = scalar_select %p567, %s39, 1
          %s569 = scalar_lea.vmem %s10, %s568
        $region68: #{tpu_custom_call.1} parent=27 // pred_fallthru
          _
        // Predicated region
        $region69: #{tpu_custom_call.1} parent=27 // pred_check
          %p570 = pneg %p349
        $region70: #{tpu_custom_call.1} parent=27 // pred_check_branch
          %572 = sbr.rel (%p570) target = $region72
        $region71: #{tpu_custom_call.1} parent=27 // pred_region
          %s573 = sand.u32 %s31, 1
          %s574 = scalar_lea.sflag [#allocation8], %s573
          %s575 = sand.u32 %s339, 1
          %s576 = scalar_lea.vmem [#allocation9], %s575
          %578 = vsyncadd %s574, 0
          %s579 = scalar_lea.hbm %s11, %s39
          %s581 = sshll.u32 %s579, 4
          %s582 = int_to_ptr.hbm [resolvable:$true] %s581
          %s583 = sshll.u32 %s576, 4
          %s584 = int_to_ptr.vmem [resolvable:$true] %s583
          %586 = dma.hbm_to_vmem [thread:$0]  %s582, 16, %s584, %s574
        $region72: #{tpu_custom_call.1} parent=27 // pred_fallthru
          _
        // Predicated region
        $region73: #{tpu_custom_call.1} parent=27 // pred_check
          %p587 = pneg %p375
        $region74: #{tpu_custom_call.1} parent=27 // pred_check_branch
          %589 = sbr.rel (%p587) target = $region76
        $region75: #{tpu_custom_call.1} parent=27 // pred_region
          %s590 = sand.u32 %s365, 1
          %s591 = scalar_lea.sflag [#allocation11], %s590
          %s592 = sand.u32 %s365, 1
          %s593 = scalar_lea.vmem [#allocation10], %s592
          %595 = vsyncadd %s591, 0
          %s596 = scalar_lea.hbm %s12, %s39
          %s598 = sshll.u32 %s596, 4
          %s599 = int_to_ptr.hbm [resolvable:$true] %s598
          %s600 = sshll.u32 %s593, 4
          %s601 = int_to_ptr.vmem [resolvable:$true] %s600
          %603 = dma.hbm_to_vmem [thread:$0]  %s599, 16, %s601, %s591
        $region76: #{tpu_custom_call.1} parent=27 // pred_fallthru
          _
      $region28: #{tpu_custom_call.1} parent=5 // pred_fallthru
        _
      %p604 = scmp.le.s32.totalorder 1, %s31
      %p605 = scmp.lt.s32.totalorder %s31, 3
      %p606 = pnand %p604, %p605
      %p607 = pneg %p606
      // Predicated region
      $region77: #{tpu_custom_call.1} parent=5 // pred_check
        _
      $region78: #{tpu_custom_call.1} parent=5 // pred_check_branch
        %609 = sbr.rel (%p606) target = $region80
      $region79: #{tpu_custom_call.1} parent=5 // pred_region
        %s610 = ssub.s32 %s31, 1
        // Predicated region
        $region81: #{tpu_custom_call.1} parent=79 // pred_check
          %p611 = pneg %p69
        $region82: #{tpu_custom_call.1} parent=79 // pred_check_branch
          %613 = sbr.rel (%p611) target = $region84
        $region83: #{tpu_custom_call.1} parent=79 // pred_region
          %615 = dma.done [#allocation5], 256
        $region84: #{tpu_custom_call.1} parent=79 // pred_fallthru
          _
        %s616 = sand.u32 %s36, 1
        %s617 = scalar_lea.sflag [#allocation8], %s616
        %s618 = sand.u32 %s186, 1
        %s619 = scalar_lea.vmem [#allocation7], %s618
        // Predicated region
        $region85: #{tpu_custom_call.1} parent=79 // pred_check
          %p620 = pneg %p199
        $region86: #{tpu_custom_call.1} parent=79 // pred_check_branch
          %622 = sbr.rel (%p620) target = $region88
        $region87: #{tpu_custom_call.1} parent=79 // pred_region
          %624 = dma.done %s617, 16
        $region88: #{tpu_custom_call.1} parent=79 // pred_fallthru
          _
        %s625 = sand.u32 %s36, 1
        %s626 = scalar_lea.sflag [#allocation8], %s625
        %s627 = sand.u32 %s342, 1
        %s628 = scalar_lea.vmem [#allocation9], %s627
        // Predicated region
        $region89: #{tpu_custom_call.1} parent=79 // pred_check
          %p629 = pneg %p355
        $region90: #{tpu_custom_call.1} parent=79 // pred_check_branch
          %631 = sbr.rel (%p629) target = $region92
        $region91: #{tpu_custom_call.1} parent=79 // pred_region
          %633 = dma.done %s626, 16
        $region92: #{tpu_custom_call.1} parent=79 // pred_fallthru
          _
        %s634 = sand.u32 %s368, 1
        %s635 = scalar_lea.sflag [#allocation11], %s634
        %s636 = sand.u32 %s368, 1
        %s637 = scalar_lea.vmem [#allocation10], %s636
        // Predicated region
        $region93: #{tpu_custom_call.1} parent=79 // pred_check
          %p638 = pneg %p381
        $region94: #{tpu_custom_call.1} parent=79 // pred_check_branch
          %640 = sbr.rel (%p638) target = $region96
        $region95: #{tpu_custom_call.1} parent=79 // pred_region
          %642 = dma.done %s635, 16
        $region96: #{tpu_custom_call.1} parent=79 // pred_fallthru
          _
        %p643 = pneg %p69
        %p644 = pneg %p66
        %p645 = scmp.lt.s32.totalorder %s41, 1
        %s646 = scalar_select %p645, %s41, 1
        %s647 = smul.addr %s646, 4
        %s648 = smul.addr %s647, 8
        %s649 = scalar_lea.vmem %s1, %s648
        %p650 = pneg %p95
        %p651 = pneg %p92
        %p652 = scmp.lt.s32.totalorder %s41, 1
        %s653 = scalar_select %p652, %s41, 1
        %s654 = scalar_lea.vmem %s2, %s653
        %p655 = pneg %p121
        %p656 = pneg %p118
        %p657 = scmp.lt.s32.totalorder %s41, 1
        %s658 = scalar_select %p657, %s41, 1
        %s659 = smul.addr %s658, 4
        %s660 = smul.addr %s659, 8
        %s661 = scalar_lea.vmem %s3, %s660
        %p662 = pneg %p147
        %p663 = pneg %p144
        %p664 = scmp.lt.s32.totalorder %s41, 1
        %s665 = scalar_select %p664, %s41, 1
        %s666 = scalar_lea.vmem %s4, %s665
        %p667 = pneg %p173
        %p668 = pneg %p170
        %s669 = sand.u32 %s36, 1
        %s670 = scalar_lea.sflag [#allocation8], %s669
        %s671 = sand.u32 %s186, 1
        %s672 = scalar_lea.vmem [#allocation7], %s671
        %p673 = pneg %p199
        %p674 = pneg %p196
        %p675 = scmp.lt.s32.totalorder %s41, 1
        %s676 = scalar_select %p675, %s41, 1
        %s677 = scalar_lea.vmem %s6, %s676
        %p678 = pneg %p225
        %p679 = pneg %p222
        %p680 = scmp.lt.s32.totalorder %s41, 1
        %s681 = scalar_select %p680, %s41, 1
        %s682 = smul.addr %s681, 4
        %s683 = smul.addr %s682, 8
        %s684 = scalar_lea.vmem %s7, %s683
        %p685 = pneg %p251
        %p686 = pneg %p248
        %p687 = scmp.lt.s32.totalorder %s41, 1
        %s688 = scalar_select %p687, %s41, 1
        %s689 = scalar_lea.vmem %s8, %s688
        %p690 = pneg %p277
        %p691 = pneg %p274
        %p692 = scmp.lt.s32.totalorder %s41, 1
        %s693 = scalar_select %p692, %s41, 1
        %s694 = smul.addr %s693, 8
        %s695 = smul.addr %s694, 8
        %s696 = scalar_lea.vmem %s9, %s695
        %p697 = pneg %p303
        %p698 = pneg %p300
        %p699 = scmp.lt.s32.totalorder %s41, 1
        %s700 = scalar_select %p699, %s41, 1
        %s701 = scalar_lea.vmem %s10, %s700
        %p702 = pneg %p329
        %p703 = pneg %p326
        %s704 = sand.u32 %s36, 1
        %s705 = scalar_lea.sflag [#allocation8], %s704
        %s706 = sand.u32 %s342, 1
        %s707 = scalar_lea.vmem [#allocation9], %s706
        %p708 = pneg %p355
        %p709 = pneg %p352
        %s710 = sand.u32 %s368, 1
        %s711 = scalar_lea.sflag [#allocation11], %s710
        %s712 = sand.u32 %s368, 1
        %s713 = scalar_lea.vmem [#allocation10], %s712
        %p714 = pneg %p381
        %p715 = pneg %p378
        %p716 = pneg %p402
        %p717 = pneg %p399
        %p718 = pneg %p423
        %p719 = pneg %p420
        %p720 = pneg %p449
        %p721 = pneg %p446
        %s722 = smul.u32 2, %s40
        %p723 = scmp.lt.s32.totalorder %s41, 1
        %s724 = scalar_select %p723, %s41, 1
        %s725 = smul.addr %s724, 4
        %s726 = smul.addr %s725, 8
        %s727 = scalar_lea.vmem %s1, %s726
        %p728 = scmp.lt.s32.totalorder %s41, 1
        %s729 = scalar_select %p728, %s41, 1
        %s730 = scalar_lea.vmem %s2, %s729
        %p731 = scmp.lt.s32.totalorder %s41, 1
        %s732 = scalar_select %p731, %s41, 1
        %s733 = smul.addr %s732, 4
        %s734 = smul.addr %s733, 8
        %s735 = scalar_lea.vmem %s3, %s734
        %p736 = scmp.lt.s32.totalorder %s41, 1
        %s737 = scalar_select %p736, %s41, 1
        %s738 = scalar_lea.vmem %s4, %s737
        %p739 = scmp.lt.s32.totalorder %s41, 1
        %s740 = scalar_select %p739, %s41, 1
        %s741 = scalar_lea.vmem %s6, %s740
        %p742 = scmp.lt.s32.totalorder %s41, 1
        %s743 = scalar_select %p742, %s41, 1
        %s744 = smul.addr %s743, 4
        %s745 = smul.addr %s744, 8
        %s746 = scalar_lea.vmem %s7, %s745
        %p747 = scmp.lt.s32.totalorder %s41, 1
        %s748 = scalar_select %p747, %s41, 1
        %s749 = scalar_lea.vmem %s8, %s748
        %p750 = scmp.lt.s32.totalorder %s41, 1
        %s751 = scalar_select %p750, %s41, 1
        %s752 = smul.addr %s751, 8
        %s753 = smul.addr %s752, 8
        %s754 = scalar_lea.vmem %s9, %s753
        %p755 = scmp.lt.s32.totalorder %s41, 1
        %s756 = scalar_select %p755, %s41, 1
        %s757 = scalar_lea.vmem %s10, %s756
        %p758 = scmp.eq.s32.totalorder %s41, 0
        // Predicated region
        $region97: #{tpu_custom_call.1} parent=79 // pred_check
          %p759 = pneg %p758
        $region98: #{tpu_custom_call.1} parent=79 // pred_check_branch
          %761 = sbr.rel (%p759) target = $region100
        $region99: #{tpu_custom_call.1} parent=79 // pred_region
          %v762 = vld [vmem:[#allocation4] sm:$0xff]
          %v763 = vld [vmem:[#allocation4 + $0x8] sm:$0xff]
          %vm764 = vcmask 261120
          %765 = vst.msk [vmem:[#allocation2] sm:$0xff] %vm764, %v762
          %766 = vst.msk [vmem:[#allocation2 + $0x8] sm:$0xff] %vm764, %v763
        $region100: #{tpu_custom_call.1} parent=79 // pred_fallthru
          _
        %v767 = vld [vmem:[#allocation2] sm:$0xff]
        %v768 = vld [vmem:[#allocation2 + $0x8] sm:$0xff]
        %v769 = vld [vmem:[%s727] sm:$0xff]
        %v770 = vld [vmem:[%s727 + $0x8] sm:$0xff]
        %v771 = vld [vmem:[%s727 + $0x10] sm:$0xff]
        %v772 = vld [vmem:[%s727 + $0x18] sm:$0xff]
        %v773 = vld [vmem:[%s730] sm:$0x1]
        %v775 = vperm.slane %v773, 0
        %vm777 = vcmask 261120
        %v779 = vsel %vm777, %v767, 0
        %v782 = vsel %vm777, %v768, 0
        %784 = vmatpush.msra.mxu0 0.0
        %785 = vmatpush.msra.mxu0 0.0
        %786 = vmatpush.msra.mxu0 0.0
        %787 = vmatpush.msra.mxu0 0.0
        %788 = vmatpush.msra.mxu0 0.0
        %789 = vmatpush.msra.mxu0 0.0
        %790 = vmatpush.msra.mxu0 0.0
        %791 = vmatpush.msra.mxu0 0.0
        %792 = vmatpush.msra.mxu0 0.0
        %793 = vmatpush.msra.mxu0 0.0
        %794 = vmatpush.msra.mxu0 0.0
        %795 = vmatpush.msra.mxu0 0.0
        %796 = vmatpush.msra.mxu0 %v772
        %797 = vmatpush.msra.mxu0 %v771
        %798 = vmatpush.msra.mxu0 %v770
        %799 = vmatpush.msra.mxu0 %v769
        %800 = vmatmul.f32.gmra.mxu0 %v779
        %v801 = vpop.f32.mrf.mxu0
        %v802 = vadd.f32 %v775, %v801
        %803 = vmatmul.f32.gmra.mxu0 %v782
        %v804 = vpop.f32.mrf.mxu0
        %v805 = vadd.f32 %v775, %v804
        %806 = vdwg.mxu0
        %809 = vrot.lane.b32.xlu0 %v802, 120
        %v810 = vpop.permute.xlu0 %809
        %811 = vrot.lane.b32.xlu0 %v805, 120
        %v812 = vpop.permute.xlu0 %811
        %813 = vrot.lane.b32.xlu0 %v802, 112
        %v814 = vpop.permute.xlu0 %813
        %815 = vrot.lane.b32.xlu0 %v805, 112
        %v816 = vpop.permute.xlu0 %815
        %817 = vrot.lane.b32.xlu0 %v802, 104
        %v818 = vpop.permute.xlu0 %817
        %819 = vrot.lane.b32.xlu0 %v805, 104
        %v820 = vpop.permute.xlu0 %819
        %821 = vrot.lane.b32.xlu0 %v802, 96
        %v822 = vpop.permute.xlu0 %821
        %vm823 = vcmask 64512
        %v824 = vsel %vm823, %v802, 0
        %v826 = vsel %vm823, %v822, 0
        %828 = vmatpush.xpose.msra.mxu0 0.0
        %829 = vmatpush.xpose.msra.mxu0 0.0
        %830 = vmatpush.xpose.msra.mxu0 0.0
        %831 = vmatpush.xpose.msra.mxu0 0.0
        %832 = vmatpush.xpose.msra.mxu0 0.0
        %833 = vmatpush.xpose.msra.mxu0 0.0
        %834 = vmatpush.xpose.msra.mxu0 0.0
        %835 = vmatpush.xpose.msra.mxu0 0.0
        %836 = vmatpush.xpose.msra.mxu0 0.0
        %837 = vmatpush.xpose.msra.mxu0 0.0
        %838 = vmatpush.xpose.msra.mxu0 0.0
        %839 = vmatpush.xpose.msra.mxu0 0.0
        %840 = vmatpush.xpose.msra.mxu0 0.0
        %841 = vmatpush.xpose.msra.mxu0 0.0
        %842 = vmatpush.xpose.msra.mxu0 0.0
        %843 = vmatpush.xpose.msra.mxu0 %v826
        %844 = vmatmul.f32.gmra.mxu0 %v824
        %v845 = vpop.f32.mrf.mxu0
        %v846 = vadd.f32 0.0, %v845
        %847 = vdwg.mxu0
        %848 = vrot.lane.b32.xlu0 %v805, 96
        %v849 = vpop.permute.xlu0 %848
        %v850 = vsel %vm823, %v805, 0
        %v852 = vsel %vm823, %v849, 0
        %854 = vmatpush.xpose.msra.mxu0 0.0
        %855 = vmatpush.xpose.msra.mxu0 0.0
        %856 = vmatpush.xpose.msra.mxu0 0.0
        %857 = vmatpush.xpose.msra.mxu0 0.0
        %858 = vmatpush.xpose.msra.mxu0 0.0
        %859 = vmatpush.xpose.msra.mxu0 0.0
        %860 = vmatpush.xpose.msra.mxu0 0.0
        %861 = vmatpush.xpose.msra.mxu0 0.0
        %862 = vmatpush.xpose.msra.mxu0 0.0
        %863 = vmatpush.xpose.msra.mxu0 0.0
        %864 = vmatpush.xpose.msra.mxu0 0.0
        %865 = vmatpush.xpose.msra.mxu0 0.0
        %866 = vmatpush.xpose.msra.mxu0 0.0
        %867 = vmatpush.xpose.msra.mxu0 0.0
        %868 = vmatpush.xpose.msra.mxu0 0.0
        %869 = vmatpush.xpose.msra.mxu0 %v852
        %870 = vmatmul.f32.gmra.mxu0 %v850
        %v871 = vpop.f32.mrf.mxu0
        %v872 = vadd.f32 0.0, %v871
        %873 = vdwg.mxu0
        %874 = vrot.lane.b32.xlu0 %v810, 96
        %v875 = vpop.permute.xlu0 %874
        %v876 = vsel %vm823, %v810, 0
        %v878 = vsel %vm823, %v875, 0
        %880 = vmatpush.xpose.msra.mxu0 0.0
        %881 = vmatpush.xpose.msra.mxu0 0.0
        %882 = vmatpush.xpose.msra.mxu0 0.0
        %883 = vmatpush.xpose.msra.mxu0 0.0
        %884 = vmatpush.xpose.msra.mxu0 0.0
        %885 = vmatpush.xpose.msra.mxu0 0.0
        %886 = vmatpush.xpose.msra.mxu0 0.0
        %887 = vmatpush.xpose.msra.mxu0 0.0
        %888 = vmatpush.xpose.msra.mxu0 0.0
        %889 = vmatpush.xpose.msra.mxu0 0.0
        %890 = vmatpush.xpose.msra.mxu0 0.0
        %891 = vmatpush.xpose.msra.mxu0 0.0
        %892 = vmatpush.xpose.msra.mxu0 0.0
        %893 = vmatpush.xpose.msra.mxu0 0.0
        %894 = vmatpush.xpose.msra.mxu0 0.0
        %895 = vmatpush.xpose.msra.mxu0 %v878
        %896 = vmatmul.f32.gmra.mxu0 %v876
        %v897 = vpop.f32.mrf.mxu0
        %v898 = vadd.f32 0.0, %v897
        %899 = vdwg.mxu0
        %900 = vrot.lane.b32.xlu0 %v812, 96
        %v901 = vpop.permute.xlu0 %900
        %v902 = vsel %vm823, %v812, 0
        %v904 = vsel %vm823, %v901, 0
        %906 = vmatpush.xpose.msra.mxu0 0.0
        %907 = vmatpush.xpose.msra.mxu0 0.0
        %908 = vmatpush.xpose.msra.mxu0 0.0
        %909 = vmatpush.xpose.msra.mxu0 0.0
        %910 = vmatpush.xpose.msra.mxu0 0.0
        %911 = vmatpush.xpose.msra.mxu0 0.0
        %912 = vmatpush.xpose.msra.mxu0 0.0
        %913 = vmatpush.xpose.msra.mxu0 0.0
        %914 = vmatpush.xpose.msra.mxu0 0.0
        %915 = vmatpush.xpose.msra.mxu0 0.0
        %916 = vmatpush.xpose.msra.mxu0 0.0
        %917 = vmatpush.xpose.msra.mxu0 0.0
        %918 = vmatpush.xpose.msra.mxu0 0.0
        %919 = vmatpush.xpose.msra.mxu0 0.0
        %920 = vmatpush.xpose.msra.mxu0 0.0
        %921 = vmatpush.xpose.msra.mxu0 %v904
        %922 = vmatmul.f32.gmra.mxu0 %v902
        %v923 = vpop.f32.mrf.mxu0
        %v924 = vadd.f32 0.0, %v923
        %925 = vdwg.mxu0
        %926 = vrot.lane.b32.xlu0 %v814, 96
        %v927 = vpop.permute.xlu0 %926
        %v928 = vsel %vm823, %v814, 0
        %v930 = vsel %vm823, %v927, 0
        %932 = vmatpush.xpose.msra.mxu0 0.0
        %933 = vmatpush.xpose.msra.mxu0 0.0
        %934 = vmatpush.xpose.msra.mxu0 0.0
        %935 = vmatpush.xpose.msra.mxu0 0.0
        %936 = vmatpush.xpose.msra.mxu0 0.0
        %937 = vmatpush.xpose.msra.mxu0 0.0
        %938 = vmatpush.xpose.msra.mxu0 0.0
        %939 = vmatpush.xpose.msra.mxu0 0.0
        %940 = vmatpush.xpose.msra.mxu0 0.0
        %941 = vmatpush.xpose.msra.mxu0 0.0
        %942 = vmatpush.xpose.msra.mxu0 0.0
        %943 = vmatpush.xpose.msra.mxu0 0.0
        %944 = vmatpush.xpose.msra.mxu0 0.0
        %945 = vmatpush.xpose.msra.mxu0 0.0
        %946 = vmatpush.xpose.msra.mxu0 0.0
        %947 = vmatpush.xpose.msra.mxu0 %v930
        %948 = vmatmul.f32.gmra.mxu0 %v928
        %v949 = vpop.f32.mrf.mxu0
        %v950 = vadd.f32 0.0, %v949
        %951 = vdwg.mxu0
        %952 = vrot.lane.b32.xlu0 %v816, 96
        %v953 = vpop.permute.xlu0 %952
        %v954 = vsel %vm823, %v816, 0
        %v956 = vsel %vm823, %v953, 0
        %958 = vmatpush.xpose.msra.mxu0 0.0
        %959 = vmatpush.xpose.msra.mxu0 0.0
        %960 = vmatpush.xpose.msra.mxu0 0.0
        %961 = vmatpush.xpose.msra.mxu0 0.0
        %962 = vmatpush.xpose.msra.mxu0 0.0
        %963 = vmatpush.xpose.msra.mxu0 0.0
        %964 = vmatpush.xpose.msra.mxu0 0.0
        %965 = vmatpush.xpose.msra.mxu0 0.0
        %966 = vmatpush.xpose.msra.mxu0 0.0
        %967 = vmatpush.xpose.msra.mxu0 0.0
        %968 = vmatpush.xpose.msra.mxu0 0.0
        %969 = vmatpush.xpose.msra.mxu0 0.0
        %970 = vmatpush.xpose.msra.mxu0 0.0
        %971 = vmatpush.xpose.msra.mxu0 0.0
        %972 = vmatpush.xpose.msra.mxu0 0.0
        %973 = vmatpush.xpose.msra.mxu0 %v956
        %974 = vmatmul.f32.gmra.mxu0 %v954
        %v975 = vpop.f32.mrf.mxu0
        %v976 = vadd.f32 0.0, %v975
        %977 = vdwg.mxu0
        %978 = vrot.lane.b32.xlu0 %v818, 96
        %v979 = vpop.permute.xlu0 %978
        %v980 = vsel %vm823, %v818, 0
        %v982 = vsel %vm823, %v979, 0
        %984 = vmatpush.xpose.msra.mxu0 0.0
        %985 = vmatpush.xpose.msra.mxu0 0.0
        %986 = vmatpush.xpose.msra.mxu0 0.0
        %987 = vmatpush.xpose.msra.mxu0 0.0
        %988 = vmatpush.xpose.msra.mxu0 0.0
        %989 = vmatpush.xpose.msra.mxu0 0.0
        %990 = vmatpush.xpose.msra.mxu0 0.0
        %991 = vmatpush.xpose.msra.mxu0 0.0
        %992 = vmatpush.xpose.msra.mxu0 0.0
        %993 = vmatpush.xpose.msra.mxu0 0.0
        %994 = vmatpush.xpose.msra.mxu0 0.0
        %995 = vmatpush.xpose.msra.mxu0 0.0
        %996 = vmatpush.xpose.msra.mxu0 0.0
        %997 = vmatpush.xpose.msra.mxu0 0.0
        %998 = vmatpush.xpose.msra.mxu0 0.0
        %999 = vmatpush.xpose.msra.mxu0 %v982
        %1000 = vmatmul.f32.gmra.mxu0 %v980
        %v1001 = vpop.f32.mrf.mxu0
        %v1002 = vadd.f32 0.0, %v1001
        %1003 = vdwg.mxu0
        %1004 = vrot.lane.b32.xlu0 %v820, 96
        %v1005 = vpop.permute.xlu0 %1004
        %v1006 = vsel %vm823, %v820, 0
        %v1008 = vsel %vm823, %v1005, 0
        %1010 = vmatpush.xpose.msra.mxu0 0.0
        %1011 = vmatpush.xpose.msra.mxu0 0.0
        %1012 = vmatpush.xpose.msra.mxu0 0.0
        %1013 = vmatpush.xpose.msra.mxu0 0.0
        %1014 = vmatpush.xpose.msra.mxu0 0.0
        %1015 = vmatpush.xpose.msra.mxu0 0.0
        %1016 = vmatpush.xpose.msra.mxu0 0.0
        %1017 = vmatpush.xpose.msra.mxu0 0.0
        %1018 = vmatpush.xpose.msra.mxu0 0.0
        %1019 = vmatpush.xpose.msra.mxu0 0.0
        %1020 = vmatpush.xpose.msra.mxu0 0.0
        %1021 = vmatpush.xpose.msra.mxu0 0.0
        %1022 = vmatpush.xpose.msra.mxu0 0.0
        %1023 = vmatpush.xpose.msra.mxu0 0.0
        %1024 = vmatpush.xpose.msra.mxu0 0.0
        %1025 = vmatpush.xpose.msra.mxu0 %v1008
        %1026 = vmatmul.f32.gmra.mxu0 %v1006
        %v1027 = vpop.f32.mrf.mxu0
        %v1028 = vadd.f32 0.0, %v1027
        %1029 = vdwg.mxu0
        %v1030 = vsel %vm823, %v846, -inf
        %1031 = vmax.xlane.f32.xlu0 %v1030
        %v1032 = vpop.xlane.xlu0 %1031
        %v1033 = vsel %vm823, %v872, -inf
        %1034 = vmax.xlane.f32.xlu0 %v1033
        %v1035 = vpop.xlane.xlu0 %1034
        %v1036 = vsel %vm823, %v898, -inf
        %1037 = vmax.xlane.f32.xlu0 %v1036
        %v1038 = vpop.xlane.xlu0 %1037
        %v1039 = vsel %vm823, %v924, -inf
        %1040 = vmax.xlane.f32.xlu0 %v1039
        %v1041 = vpop.xlane.xlu0 %1040
        %v1042 = vsel %vm823, %v950, -inf
        %1043 = vmax.xlane.f32.xlu0 %v1042
        %v1044 = vpop.xlane.xlu0 %1043
        %v1045 = vsel %vm823, %v976, -inf
        %1046 = vmax.xlane.f32.xlu0 %v1045
        %v1047 = vpop.xlane.xlu0 %1046
        %v1048 = vsel %vm823, %v1002, -inf
        %1049 = vmax.xlane.f32.xlu0 %v1048
        %v1050 = vpop.xlane.xlu0 %1049
        %v1051 = vsel %vm823, %v1028, -inf
        %1052 = vmax.xlane.f32.xlu0 %v1051
        %v1053 = vpop.xlane.xlu0 %1052
        %v1054 = vsub.f32 %v846, %v1032
        %v1055 = vsub.f32 %v872, %v1035
        %v1056 = vsub.f32 %v898, %v1038
        %v1057 = vsub.f32 %v924, %v1041
        %v1058 = vsub.f32 %v950, %v1044
        %v1059 = vsub.f32 %v976, %v1047
        %v1060 = vsub.f32 %v1002, %v1050
        %v1061 = vsub.f32 %v1028, %v1053
        %v1062 = vmul.f32 %v1054, 1.442695
        %v1063 = vpow.pop %v1062
        %v1064 = vmul.f32 %v1055, 1.442695
        %v1065 = vpow.pop %v1064
        %v1066 = vmul.f32 %v1056, 1.442695
        %v1067 = vpow.pop %v1066
        %v1068 = vmul.f32 %v1057, 1.442695
        %v1069 = vpow.pop %v1068
        %v1070 = vmul.f32 %v1058, 1.442695
        %v1071 = vpow.pop %v1070
        %v1072 = vmul.f32 %v1059, 1.442695
        %v1073 = vpow.pop %v1072
        %v1074 = vmul.f32 %v1060, 1.442695
        %v1075 = vpow.pop %v1074
        %v1076 = vmul.f32 %v1061, 1.442695
        %v1077 = vpow.pop %v1076
        %v1078 = vsel %vm823, %v1063, 0.0
        %1079 = vadd.xlane.f32.xlu0 %v1078
        %v1080 = vpop.xlane.xlu0 %1079
        %v1081 = vsel %vm823, %v1065, 0.0
        %1082 = vadd.xlane.f32.xlu0 %v1081
        %v1083 = vpop.xlane.xlu0 %1082
        %v1084 = vsel %vm823, %v1067, 0.0
        %1085 = vadd.xlane.f32.xlu0 %v1084
        %v1086 = vpop.xlane.xlu0 %1085
        %v1087 = vsel %vm823, %v1069, 0.0
        %1088 = vadd.xlane.f32.xlu0 %v1087
        %v1089 = vpop.xlane.xlu0 %1088
        %v1090 = vsel %vm823, %v1071, 0.0
        %1091 = vadd.xlane.f32.xlu0 %v1090
        %v1092 = vpop.xlane.xlu0 %1091
        %v1093 = vsel %vm823, %v1073, 0.0
        %1094 = vadd.xlane.f32.xlu0 %v1093
        %v1095 = vpop.xlane.xlu0 %1094
        %v1096 = vsel %vm823, %v1075, 0.0
        %1097 = vadd.xlane.f32.xlu0 %v1096
        %v1098 = vpop.xlane.xlu0 %1097
        %v1099 = vsel %vm823, %v1077, 0.0
        %1100 = vadd.xlane.f32.xlu0 %v1099
        %v1101 = vpop.xlane.xlu0 %1100
        %v1102 = vrcp.pop %v1080
        %v1103 = vrcp.pop %v1083
        %v1104 = vrcp.pop %v1086
        %v1105 = vrcp.pop %v1089
        %v1106 = vrcp.pop %v1092
        %v1107 = vrcp.pop %v1095
        %v1108 = vrcp.pop %v1098
        %v1109 = vrcp.pop %v1101
        %v1110 = vmul.f32 %v1063, %v1102
        %v1111 = vmul.f32 %v1065, %v1103
        %v1112 = vmul.f32 %v1067, %v1104
        %v1113 = vmul.f32 %v1069, %v1105
        %v1114 = vmul.f32 %v1071, %v1106
        %v1115 = vmul.f32 %v1073, %v1107
        %v1116 = vmul.f32 %v1075, %v1108
        %v1117 = vmul.f32 %v1077, %v1109
        %1118 = vrot.lane.b32.xlu0 %v802, 64
        %v1119 = vpop.permute.xlu0 %1118
        %v1122 = vsel %vm823, %v1110, 0
        %1124 = vmatpush.msra.mxu0 0.0
        %1125 = vmatpush.msra.mxu0 0.0
        %1126 = vmatpush.msra.mxu0 0.0
        %1127 = vmatpush.msra.mxu0 0.0
        %1128 = vmatpush.msra.mxu0 0.0
        %1129 = vmatpush.msra.mxu0 0.0
        %1130 = vmatpush.msra.mxu0 0.0
        %1131 = vmatpush.msra.mxu0 0.0
        %1132 = vmatpush.msra.mxu0 0.0
        %1133 = vmatpush.msra.mxu0 0.0
        %1134 = vmatpush.msra.mxu0 0.0
        %1135 = vmatpush.msra.mxu0 0.0
        %1136 = vmatpush.msra.mxu0 0.0
        %1137 = vmatpush.msra.mxu0 0.0
        %1138 = vmatpush.msra.mxu0 0.0
        %1139 = vmatpush.msra.mxu0 %v1119
        %1140 = vmatmul.f32.gmra.mxu0 %v1122
        %v1141 = vpop.f32.mrf.mxu0
        %v1142 = vadd.f32 0.0, %v1141
        %1143 = vdwg.mxu0
        %1144 = vrot.lane.b32.xlu0 %v805, 64
        %v1145 = vpop.permute.xlu0 %1144
        %v1148 = vsel %vm823, %v1111, 0
        %1150 = vmatpush.msra.mxu0 0.0
        %1151 = vmatpush.msra.mxu0 0.0
        %1152 = vmatpush.msra.mxu0 0.0
        %1153 = vmatpush.msra.mxu0 0.0
        %1154 = vmatpush.msra.mxu0 0.0
        %1155 = vmatpush.msra.mxu0 0.0
        %1156 = vmatpush.msra.mxu0 0.0
        %1157 = vmatpush.msra.mxu0 0.0
        %1158 = vmatpush.msra.mxu0 0.0
        %1159 = vmatpush.msra.mxu0 0.0
        %1160 = vmatpush.msra.mxu0 0.0
        %1161 = vmatpush.msra.mxu0 0.0
        %1162 = vmatpush.msra.mxu0 0.0
        %1163 = vmatpush.msra.mxu0 0.0
        %1164 = vmatpush.msra.mxu0 0.0
        %1165 = vmatpush.msra.mxu0 %v1145
        %1166 = vmatmul.f32.gmra.mxu0 %v1148
        %v1167 = vpop.f32.mrf.mxu0
        %v1168 = vadd.f32 0.0, %v1167
        %1169 = vdwg.mxu0
        %1170 = vrot.lane.b32.xlu0 %v810, 64
        %v1171 = vpop.permute.xlu0 %1170
        %v1174 = vsel %vm823, %v1112, 0
        %1176 = vmatpush.msra.mxu0 0.0
        %1177 = vmatpush.msra.mxu0 0.0
        %1178 = vmatpush.msra.mxu0 0.0
        %1179 = vmatpush.msra.mxu0 0.0
        %1180 = vmatpush.msra.mxu0 0.0
        %1181 = vmatpush.msra.mxu0 0.0
        %1182 = vmatpush.msra.mxu0 0.0
        %1183 = vmatpush.msra.mxu0 0.0
        %1184 = vmatpush.msra.mxu0 0.0
        %1185 = vmatpush.msra.mxu0 0.0
        %1186 = vmatpush.msra.mxu0 0.0
        %1187 = vmatpush.msra.mxu0 0.0
        %1188 = vmatpush.msra.mxu0 0.0
        %1189 = vmatpush.msra.mxu0 0.0
        %1190 = vmatpush.msra.mxu0 0.0
        %1191 = vmatpush.msra.mxu0 %v1171
        %1192 = vmatmul.f32.gmra.mxu0 %v1174
        %v1193 = vpop.f32.mrf.mxu0
        %v1194 = vadd.f32 0.0, %v1193
        %1195 = vdwg.mxu0
        %1196 = vrot.lane.b32.xlu0 %v812, 64
        %v1197 = vpop.permute.xlu0 %1196
        %v1200 = vsel %vm823, %v1113, 0
        %1202 = vmatpush.msra.mxu0 0.0
        %1203 = vmatpush.msra.mxu0 0.0
        %1204 = vmatpush.msra.mxu0 0.0
        %1205 = vmatpush.msra.mxu0 0.0
        %1206 = vmatpush.msra.mxu0 0.0
        %1207 = vmatpush.msra.mxu0 0.0
        %1208 = vmatpush.msra.mxu0 0.0
        %1209 = vmatpush.msra.mxu0 0.0
        %1210 = vmatpush.msra.mxu0 0.0
        %1211 = vmatpush.msra.mxu0 0.0
        %1212 = vmatpush.msra.mxu0 0.0
        %1213 = vmatpush.msra.mxu0 0.0
        %1214 = vmatpush.msra.mxu0 0.0
        %1215 = vmatpush.msra.mxu0 0.0
        %1216 = vmatpush.msra.mxu0 0.0
        %1217 = vmatpush.msra.mxu0 %v1197
        %1218 = vmatmul.f32.gmra.mxu0 %v1200
        %v1219 = vpop.f32.mrf.mxu0
        %v1220 = vadd.f32 0.0, %v1219
        %1221 = vdwg.mxu0
        %1222 = vrot.lane.b32.xlu0 %v814, 64
        %v1223 = vpop.permute.xlu0 %1222
        %v1226 = vsel %vm823, %v1114, 0
        %1228 = vmatpush.msra.mxu0 0.0
        %1229 = vmatpush.msra.mxu0 0.0
        %1230 = vmatpush.msra.mxu0 0.0
        %1231 = vmatpush.msra.mxu0 0.0
        %1232 = vmatpush.msra.mxu0 0.0
        %1233 = vmatpush.msra.mxu0 0.0
        %1234 = vmatpush.msra.mxu0 0.0
        %1235 = vmatpush.msra.mxu0 0.0
        %1236 = vmatpush.msra.mxu0 0.0
        %1237 = vmatpush.msra.mxu0 0.0
        %1238 = vmatpush.msra.mxu0 0.0
        %1239 = vmatpush.msra.mxu0 0.0
        %1240 = vmatpush.msra.mxu0 0.0
        %1241 = vmatpush.msra.mxu0 0.0
        %1242 = vmatpush.msra.mxu0 0.0
        %1243 = vmatpush.msra.mxu0 %v1223
        %1244 = vmatmul.f32.gmra.mxu0 %v1226
        %v1245 = vpop.f32.mrf.mxu0
        %v1246 = vadd.f32 0.0, %v1245
        %1247 = vdwg.mxu0
        %1248 = vrot.lane.b32.xlu0 %v816, 64
        %v1249 = vpop.permute.xlu0 %1248
        %v1252 = vsel %vm823, %v1115, 0
        %1254 = vmatpush.msra.mxu0 0.0
        %1255 = vmatpush.msra.mxu0 0.0
        %1256 = vmatpush.msra.mxu0 0.0
        %1257 = vmatpush.msra.mxu0 0.0
        %1258 = vmatpush.msra.mxu0 0.0
        %1259 = vmatpush.msra.mxu0 0.0
        %1260 = vmatpush.msra.mxu0 0.0
        %1261 = vmatpush.msra.mxu0 0.0
        %1262 = vmatpush.msra.mxu0 0.0
        %1263 = vmatpush.msra.mxu0 0.0
        %1264 = vmatpush.msra.mxu0 0.0
        %1265 = vmatpush.msra.mxu0 0.0
        %1266 = vmatpush.msra.mxu0 0.0
        %1267 = vmatpush.msra.mxu0 0.0
        %1268 = vmatpush.msra.mxu0 0.0
        %1269 = vmatpush.msra.mxu0 %v1249
        %1270 = vmatmul.f32.gmra.mxu0 %v1252
        %v1271 = vpop.f32.mrf.mxu0
        %v1272 = vadd.f32 0.0, %v1271
        %1273 = vdwg.mxu0
        %1274 = vrot.lane.b32.xlu0 %v818, 64
        %v1275 = vpop.permute.xlu0 %1274
        %v1278 = vsel %vm823, %v1116, 0
        %1280 = vmatpush.msra.mxu0 0.0
        %1281 = vmatpush.msra.mxu0 0.0
        %1282 = vmatpush.msra.mxu0 0.0
        %1283 = vmatpush.msra.mxu0 0.0
        %1284 = vmatpush.msra.mxu0 0.0
        %1285 = vmatpush.msra.mxu0 0.0
        %1286 = vmatpush.msra.mxu0 0.0
        %1287 = vmatpush.msra.mxu0 0.0
        %1288 = vmatpush.msra.mxu0 0.0
        %1289 = vmatpush.msra.mxu0 0.0
        %1290 = vmatpush.msra.mxu0 0.0
        %1291 = vmatpush.msra.mxu0 0.0
        %1292 = vmatpush.msra.mxu0 0.0
        %1293 = vmatpush.msra.mxu0 0.0
        %1294 = vmatpush.msra.mxu0 0.0
        %1295 = vmatpush.msra.mxu0 %v1275
        %1296 = vmatmul.f32.gmra.mxu0 %v1278
        %v1297 = vpop.f32.mrf.mxu0
        %v1298 = vadd.f32 0.0, %v1297
        %1299 = vdwg.mxu0
        %1300 = vrot.lane.b32.xlu0 %v820, 64
        %v1301 = vpop.permute.xlu0 %1300
        %v1304 = vsel %vm823, %v1117, 0
        %1306 = vmatpush.msra.mxu0 0.0
        %1307 = vmatpush.msra.mxu0 0.0
        %1308 = vmatpush.msra.mxu0 0.0
        %1309 = vmatpush.msra.mxu0 0.0
        %1310 = vmatpush.msra.mxu0 0.0
        %1311 = vmatpush.msra.mxu0 0.0
        %1312 = vmatpush.msra.mxu0 0.0
        %1313 = vmatpush.msra.mxu0 0.0
        %1314 = vmatpush.msra.mxu0 0.0
        %1315 = vmatpush.msra.mxu0 0.0
        %1316 = vmatpush.msra.mxu0 0.0
        %1317 = vmatpush.msra.mxu0 0.0
        %1318 = vmatpush.msra.mxu0 0.0
        %1319 = vmatpush.msra.mxu0 0.0
        %1320 = vmatpush.msra.mxu0 0.0
        %1321 = vmatpush.msra.mxu0 %v1301
        %1322 = vmatmul.f32.gmra.mxu0 %v1304
        %v1323 = vpop.f32.mrf.mxu0
        %v1324 = vadd.f32 0.0, %v1323
        %1325 = vdwg.mxu0
        %1328 = vrot.lane.b32.xlu0 %v1194, 8
        %v1329 = vpop.permute.xlu0 %1328
        %1330 = vrot.lane.b32.xlu0 %v1220, 8
        %v1331 = vpop.permute.xlu0 %1330
        %1336 = vrot.lane.b32.xlu0 %v1246, 16
        %v1337 = vpop.permute.xlu0 %1336
        %1338 = vrot.lane.b32.xlu0 %v1272, 16
        %v1339 = vpop.permute.xlu0 %1338
        %1344 = vrot.lane.b32.xlu0 %v1298, 24
        %v1345 = vpop.permute.xlu0 %1344
        %1346 = vrot.lane.b32.xlu0 %v1324, 24
        %v1347 = vpop.permute.xlu0 %1346
        %v1350 = vsel %vm823, %v1142, %v1329
        %v1351 = vsel %vm823, %v1168, %v1331
        %vm1352 = vcmask 130048
        %v1353 = vsel %vm1352, %v1350, %v1337
        %v1354 = vsel %vm1352, %v1351, %v1339
        %vm1355 = vcmask 195584
        %v1356 = vsel %vm1355, %v1353, %v1345
        %v1357 = vsel %vm1355, %v1354, %v1347
        %v1358 = vld [vmem:[%s735] sm:$0xff]
        %v1359 = vld [vmem:[%s735 + $0x8] sm:$0xff]
        %v1360 = vld [vmem:[%s735 + $0x10] sm:$0xff]
        %v1361 = vld [vmem:[%s735 + $0x18] sm:$0xff]
        %v1362 = vld [vmem:[%s738] sm:$0x1]
        %v1364 = vperm.slane %v1362, 0
        %v1367 = vsel %vm777, %v1356, 0
        %v1370 = vsel %vm777, %v1357, 0
        %1372 = vmatpush.msra.mxu0 0.0
        %1373 = vmatpush.msra.mxu0 0.0
        %1374 = vmatpush.msra.mxu0 0.0
        %1375 = vmatpush.msra.mxu0 0.0
        %1376 = vmatpush.msra.mxu0 0.0
        %1377 = vmatpush.msra.mxu0 0.0
        %1378 = vmatpush.msra.mxu0 0.0
        %1379 = vmatpush.msra.mxu0 0.0
        %1380 = vmatpush.msra.mxu0 0.0
        %1381 = vmatpush.msra.mxu0 0.0
        %1382 = vmatpush.msra.mxu0 0.0
        %1383 = vmatpush.msra.mxu0 0.0
        %1384 = vmatpush.msra.mxu0 %v1361
        %1385 = vmatpush.msra.mxu0 %v1360
        %1386 = vmatpush.msra.mxu0 %v1359
        %1387 = vmatpush.msra.mxu0 %v1358
        %1388 = vmatmul.f32.gmra.mxu0 %v1367
        %v1389 = vpop.f32.mrf.mxu0
        %v1390 = vadd.f32 %v1364, %v1389
        %1391 = vmatmul.f32.gmra.mxu0 %v1370
        %v1392 = vpop.f32.mrf.mxu0
        %v1393 = vadd.f32 %v1364, %v1392
        %1394 = vdwg.mxu0
        %v1395 = vadd.f32 %v767, %v1390
        %v1396 = vadd.f32 %v768, %v1393
        %v1397 = vld [vmem:[%s619] sm:$0x1]
        %v1398 = vld [vmem:[%s741] sm:$0x1]
        %v1399 = vsel %vm777, %v1395, 0.0
        %1400 = vadd.xlane.f32.xlu0 %v1399
        %v1401 = vpop.xlane.xlu0 %1400
        %v1402 = vsel %vm777, %v1396, 0.0
        %1403 = vadd.xlane.f32.xlu0 %v1402
        %v1404 = vpop.xlane.xlu0 %1403
        %v1405 = vrcp.pop 32.0
        %v1406 = vmul.f32 32.0, %v1405
        %v1407 = vsub.f32 1.0, %v1406
        %v1408 = vmul.f32 %v1405, %v1407
        %v1409 = vadd.f32 %v1405, %v1408
        %vm1410 = vweird.f32 %v1405
        %v1411 = vsel %vm1410, %v1405, %v1409
        %v1412 = vmul.f32 %v1401, %v1411
        %v1413 = vmul.f32 %v1404, %v1411
        %v1414 = vmul.f32 %v1395, %v1395
        %v1415 = vmul.f32 %v1396, %v1396
        %v1416 = vsel %vm777, %v1414, 0.0
        %1417 = vadd.xlane.f32.xlu0 %v1416
        %v1418 = vpop.xlane.xlu0 %1417
        %v1419 = vsel %vm777, %v1415, 0.0
        %1420 = vadd.xlane.f32.xlu0 %v1419
        %v1421 = vpop.xlane.xlu0 %1420
        %v1422 = vmul.f32 %v1418, %v1411
        %v1423 = vmul.f32 %v1421, %v1411
        %v1424 = vmul.f32 %v1412, %v1412
        %v1425 = vmul.f32 %v1413, %v1413
        %v1426 = vsub.f32 %v1422, %v1424
        %v1427 = vsub.f32 %v1423, %v1425
        %v1428 = vsub.f32 %v1395, %v1412
        %v1429 = vsub.f32 %v1396, %v1413
        %v1430 = vadd.f32 %v1426, 1e-05
        %v1431 = vadd.f32 %v1427, 1e-05
        %v1432 = vrsqrt.pop %v1430
        %v1433 = vmul.f32 %v1432, %v1430
        %v1434 = vmul.f32 %v1433, %v1432
        %v1435 = vmul.f32 0.5, %v1434
        %v1436 = vsub.f32 1.5, %v1435
        %v1437 = vmul.f32 %v1432, %v1436
        %vm1438 = vweird.f32 %v1430
        %vm1439 = vweird.f32 %v1432
        %vm1440 = vmor %vm1438, %vm1439
        %v1441 = vsel %vm1440, %v1432, %v1437
        %v1442 = vrsqrt.pop %v1431
        %v1443 = vmul.f32 %v1442, %v1431
        %v1444 = vmul.f32 %v1443, %v1442
        %v1445 = vmul.f32 0.5, %v1444
        %v1446 = vsub.f32 1.5, %v1445
        %v1447 = vmul.f32 %v1442, %v1446
        %vm1448 = vweird.f32 %v1431
        %vm1449 = vweird.f32 %v1442
        %vm1450 = vmor %vm1448, %vm1449
        %v1451 = vsel %vm1450, %v1442, %v1447
        %v1452 = vmul.f32 %v1428, %v1441
        %v1453 = vmul.f32 %v1429, %v1451
        %v1455 = vperm.slane %v1397, 0
        %v1457 = vmul.f32 %v1452, %v1455
        %v1458 = vmul.f32 %v1453, %v1455
        %v1460 = vperm.slane %v1398, 0
        %v1462 = vadd.f32 %v1457, %v1460
        %v1463 = vadd.f32 %v1458, %v1460
        %v1464 = vld [vmem:[%s746] sm:$0xff]
        %v1465 = vld [vmem:[%s746 + $0x8] sm:$0xff]
        %v1466 = vld [vmem:[%s746 + $0x10] sm:$0xff]
        %v1467 = vld [vmem:[%s746 + $0x18] sm:$0xff]
        %v1468 = vld [vmem:[%s749] sm:$0x1]
        %v1470 = vperm.slane %v1468, 0
        %v1473 = vsel %vm777, %v1462, 0
        %v1476 = vsel %vm777, %v1463, 0
        %1478 = vmatpush.msra.mxu0 0.0
        %1479 = vmatpush.msra.mxu0 0.0
        %1480 = vmatpush.msra.mxu0 0.0
        %1481 = vmatpush.msra.mxu0 0.0
        %1482 = vmatpush.msra.mxu0 0.0
        %1483 = vmatpush.msra.mxu0 0.0
        %1484 = vmatpush.msra.mxu0 0.0
        %1485 = vmatpush.msra.mxu0 0.0
        %1486 = vmatpush.msra.mxu0 0.0
        %1487 = vmatpush.msra.mxu0 0.0
        %1488 = vmatpush.msra.mxu0 0.0
        %1489 = vmatpush.msra.mxu0 0.0
        %1490 = vmatpush.msra.mxu0 %v1467
        %1491 = vmatpush.msra.mxu0 %v1466
        %1492 = vmatpush.msra.mxu0 %v1465
        %1493 = vmatpush.msra.mxu0 %v1464
        %1494 = vmatmul.f32.gmra.mxu0 %v1473
        %v1495 = vpop.f32.mrf.mxu0
        %v1496 = vadd.f32 %v1470, %v1495
        %1497 = vmatmul.f32.gmra.mxu0 %v1476
        %v1498 = vpop.f32.mrf.mxu0
        %v1499 = vadd.f32 %v1470, %v1498
        %1500 = vdwg.mxu0
        %v1501 = vmax.f32 %v1496, 0.0
        %v1502 = vmax.f32 %v1499, 0.0
        %v1503 = vld [vmem:[%s754] sm:$0xff]
        %v1504 = vld [vmem:[%s754 + $0x8] sm:$0xff]
        %v1505 = vld [vmem:[%s754 + $0x10] sm:$0xff]
        %v1506 = vld [vmem:[%s754 + $0x18] sm:$0xff]
        %v1507 = vld [vmem:[%s754 + $0x20] sm:$0xff]
        %v1508 = vld [vmem:[%s754 + $0x28] sm:$0xff]
        %v1509 = vld [vmem:[%s754 + $0x30] sm:$0xff]
        %v1510 = vld [vmem:[%s754 + $0x38] sm:$0xff]
        %v1511 = vld [vmem:[%s757] sm:$0x1]
        %v1513 = vperm.slane %v1511, 0
        %vm1515 = vcmask 523264
        %v1517 = vsel %vm1515, %v1501, 0
        %v1520 = vsel %vm1515, %v1502, 0
        %1522 = vmatpush.msra.mxu0 0.0
        %1523 = vmatpush.msra.mxu0 0.0
        %1524 = vmatpush.msra.mxu0 0.0
        %1525 = vmatpush.msra.mxu0 0.0
        %1526 = vmatpush.msra.mxu0 0.0
        %1527 = vmatpush.msra.mxu0 0.0
        %1528 = vmatpush.msra.mxu0 0.0
        %1529 = vmatpush.msra.mxu0 0.0
        %1530 = vmatpush.msra.mxu0 %v1510
        %1531 = vmatpush.msra.mxu0 %v1509
        %1532 = vmatpush.msra.mxu0 %v1508
        %1533 = vmatpush.msra.mxu0 %v1507
        %1534 = vmatpush.msra.mxu0 %v1506
        %1535 = vmatpush.msra.mxu0 %v1505
        %1536 = vmatpush.msra.mxu0 %v1504
        %1537 = vmatpush.msra.mxu0 %v1503
        %1538 = vmatmul.f32.gmra.mxu0 %v1517
        %v1539 = vpop.f32.mrf.mxu0
        %v1540 = vadd.f32 %v1513, %v1539
        %1541 = vmatmul.f32.gmra.mxu0 %v1520
        %v1542 = vpop.f32.mrf.mxu0
        %v1543 = vadd.f32 %v1513, %v1542
        %1544 = vdwg.mxu0
        %v1545 = vadd.f32 %v1462, %v1540
        %v1546 = vadd.f32 %v1463, %v1543
        %v1547 = vld [vmem:[%s628] sm:$0x1]
        %v1548 = vld [vmem:[%s637] sm:$0x1]
        %v1549 = vsel %vm777, %v1545, 0.0
        %1550 = vadd.xlane.f32.xlu0 %v1549
        %v1551 = vpop.xlane.xlu0 %1550
        %v1552 = vsel %vm777, %v1546, 0.0
        %1553 = vadd.xlane.f32.xlu0 %v1552
        %v1554 = vpop.xlane.xlu0 %1553
        %v1555 = vmul.f32 %v1551, %v1411
        %v1556 = vmul.f32 %v1554, %v1411
        %v1557 = vmul.f32 %v1545, %v1545
        %v1558 = vmul.f32 %v1546, %v1546
        %v1559 = vsel %vm777, %v1557, 0.0
        %1560 = vadd.xlane.f32.xlu0 %v1559
        %v1561 = vpop.xlane.xlu0 %1560
        %v1562 = vsel %vm777, %v1558, 0.0
        %1563 = vadd.xlane.f32.xlu0 %v1562
        %v1564 = vpop.xlane.xlu0 %1563
        %v1565 = vmul.f32 %v1561, %v1411
        %v1566 = vmul.f32 %v1564, %v1411
        %v1567 = vmul.f32 %v1555, %v1555
        %v1568 = vmul.f32 %v1556, %v1556
        %v1569 = vsub.f32 %v1565, %v1567
        %v1570 = vsub.f32 %v1566, %v1568
        %v1571 = vsub.f32 %v1545, %v1555
        %v1572 = vsub.f32 %v1546, %v1556
        %v1573 = vadd.f32 %v1569, 1e-05
        %v1574 = vadd.f32 %v1570, 1e-05
        %v1575 = vrsqrt.pop %v1573
        %v1576 = vmul.f32 %v1575, %v1573
        %v1577 = vmul.f32 %v1576, %v1575
        %v1578 = vmul.f32 0.5, %v1577
        %v1579 = vsub.f32 1.5, %v1578
        %v1580 = vmul.f32 %v1575, %v1579
        %vm1581 = vweird.f32 %v1573
        %vm1582 = vweird.f32 %v1575
        %vm1583 = vmor %vm1581, %vm1582
        %v1584 = vsel %vm1583, %v1575, %v1580
        %v1585 = vrsqrt.pop %v1574
        %v1586 = vmul.f32 %v1585, %v1574
        %v1587 = vmul.f32 %v1586, %v1585
        %v1588 = vmul.f32 0.5, %v1587
        %v1589 = vsub.f32 1.5, %v1588
        %v1590 = vmul.f32 %v1585, %v1589
        %vm1591 = vweird.f32 %v1574
        %vm1592 = vweird.f32 %v1585
        %vm1593 = vmor %vm1591, %vm1592
        %v1594 = vsel %vm1593, %v1585, %v1590
        %v1595 = vmul.f32 %v1571, %v1584
        %v1596 = vmul.f32 %v1572, %v1594
        %v1598 = vperm.slane %v1547, 0
        %v1600 = vmul.f32 %v1595, %v1598
        %v1601 = vmul.f32 %v1596, %v1598
        %v1603 = vperm.slane %v1548, 0
        %v1605 = vadd.f32 %v1600, %v1603
        %v1606 = vadd.f32 %v1601, %v1603
        %1607 = vst.msk [vmem:[#allocation2] sm:$0xff] %vm777, %v1605
        %1608 = vst.msk [vmem:[#allocation2 + $0x8] sm:$0xff] %vm777, %v1606
        %p1609 = scmp.eq.s32.totalorder %s41, 1
        // Predicated region
        $region101: #{tpu_custom_call.1} parent=79 // pred_check
          %p1610 = pneg %p1609
        $region102: #{tpu_custom_call.1} parent=79 // pred_check_branch
          %1612 = sbr.rel (%p1610) target = $region104
        $region103: #{tpu_custom_call.1} parent=79 // pred_region
          %v1613 = vld [vmem:[%s13] sm:$0x1]
          %v1614 = vld [vmem:[#allocation3] sm:$0x1]
          %1616 = vset.pattern.permute.xlu0 0
          %1617 = vperm.xlu0 %1616, %v1614
          %v1618 = vpop.permute.xlu0 %1617
          %v1620 = vperm.slane %v1618, 0
          %v1622 = vsel %vm777, %v1613, 0
          %v1625 = vsel %vm777, %v1605, 0
          %v1628 = vsel %vm777, %v1606, 0
          %1630 = vmatpush.xpose.msra.mxu0 0.0
          %1631 = vmatpush.xpose.msra.mxu0 0.0
          %1632 = vmatpush.xpose.msra.mxu0 0.0
          %1633 = vmatpush.xpose.msra.mxu0 0.0
          %1634 = vmatpush.xpose.msra.mxu0 0.0
          %1635 = vmatpush.xpose.msra.mxu0 0.0
          %1636 = vmatpush.xpose.msra.mxu0 0.0
          %1637 = vmatpush.xpose.msra.mxu0 0.0
          %1638 = vmatpush.xpose.msra.mxu0 0.0
          %1639 = vmatpush.xpose.msra.mxu0 0.0
          %1640 = vmatpush.xpose.msra.mxu0 0.0
          %1641 = vmatpush.xpose.msra.mxu0 0.0
          %1642 = vmatpush.xpose.msra.mxu0 0.0
          %1643 = vmatpush.xpose.msra.mxu0 0.0
          %1644 = vmatpush.xpose.msra.mxu0 %v1628
          %1645 = vmatpush.xpose.msra.mxu0 %v1625
          %1646 = vmatmul.f32.gmra.mxu0 %v1622
          %v1647 = vpop.f32.mrf.mxu0
          %v1648 = vadd.f32 %v1620, %v1647
          %1649 = vdwg.mxu0
          %vm1650 = vcmask 122880
          %1651 = vst.msk [vmem:[#allocation12] sm:$0x1] %vm1650, %v1648
        $region104: #{tpu_custom_call.1} parent=79 // pred_fallthru
          _
        // Predicated region
        $region105: #{tpu_custom_call.1} parent=79 // pred_check
          %p1652 = pneg %p446
        $region106: #{tpu_custom_call.1} parent=79 // pred_check_branch
          %1654 = sbr.rel (%p1652) target = $region108
        $region107: #{tpu_custom_call.1} parent=79 // pred_region
          %1656 = vsyncadd [#allocation6], 0
          %s1657 = scalar_lea.hbm %s15, %s40
          %s1659 = sshll.u32 [#allocation12], 4
          %s1660 = int_to_ptr.vmem [resolvable:$true] %s1659
          %s1661 = sshll.u32 %s1657, 4
          %s1662 = int_to_ptr.hbm [resolvable:$true] %s1661
          %1664 = dma.vmem_to_hbm [thread:$0]  %s1660, 16, %s1662, [#allocation6]
        $region108: #{tpu_custom_call.1} parent=79 // pred_fallthru
          _
        // Predicated region
        $region109: #{tpu_custom_call.1} parent=79 // pred_check
          %p1665 = pneg %p446
        $region110: #{tpu_custom_call.1} parent=79 // pred_check_branch
          %1667 = sbr.rel (%p1665) target = $region112
        $region111: #{tpu_custom_call.1} parent=79 // pred_region
          %1669 = dma.done [#allocation6], 16
        $region112: #{tpu_custom_call.1} parent=79 // pred_fallthru
          _
      $region80: #{tpu_custom_call.1} parent=5 // pred_fallthru
        _
      %p1670 = scmp.le.s32.totalorder 2, %s31
      // Predicated region
      $region113: #{tpu_custom_call.1} parent=5 // pred_check
        %p1671 = pneg %p1670
      $region114: #{tpu_custom_call.1} parent=5 // pred_check_branch
        %1673 = sbr.rel (%p1671) target = $region116
      $region115: #{tpu_custom_call.1} parent=5 // pred_region
        %s1674 = ssub.s32 %s31, 2
      $region116: #{tpu_custom_call.1} parent=5 // pred_fallthru
        _
    $region6: #{tpu_custom_call.1} parent=1 // loop_footer
      %s35 = sadd.s32 1, %s31
    $region7: #{tpu_custom_call.1} parent=1 // loop_footer_branch
      %30 = sbr.rel target = $region3
    $region8: #{tpu_custom_call.1} parent=1 // loop_exit
      _
    %1675 = vsyncpa [#allocation5], 1
    %s1676 = scalar_lea.sflag [#allocation5], 1
    %1677 = vsyncpa %s1676, 1
    %1678 = vsyncpa [#allocation8], 1
    %s1679 = scalar_lea.sflag [#allocation8], 1
    %1680 = vsyncpa %s1679, 1
    %1681 = vsyncpa [#allocation11], 1
    %s1682 = scalar_lea.sflag [#allocation11], 1
    %1683 = vsyncpa %s1682, 1
    %1684 = vsyncpa [#allocation6], 1
    %s1685 = scalar_lea.sflag [#allocation6], 1
    %1686 = vsyncpa %s1685, 1

</llo_original>
